<compile_context>
chip_gen: v7x
topology: tpu7x:2x2x1
jax: 0.10.0
libtpu: 0.0.40
codegen_flags: <defaults>
</compile_context>

<pallas_src>
import functools

import jax
import jax.numpy as jnp
from jax import lax
from jax.experimental import pallas as pl
from jax.experimental.pallas import tpu as pltpu

EPS = 1e-4
QUANTILE_SCALE = 0.99
LANES = 128                      # vreg lane width; lane-dense row length


def _pg_quantile_kernel(x_ref, bmat_ref, o_ref, *, n_levels, group_size,
                        exact_divide):
    """One (tile, 128) block; each 128-lane row packs 128//group_size groups.

    Per group of `group_size` consecutive lanes this computes
      mn = group minimum        (torch.kthvalue k = 1)
      m2 = 2nd largest value    (torch.kthvalue k = group_size - 1)
    via a segmented XLU roll tree, broadcasts the group-start results to every
    lane with one MXU matmul per statistic, then fake-quantizes the block.
    Assumes finite inputs (NaN/Inf weights diverge from torch.kthvalue anyway).
    """
    x = x_ref[...].astype(jnp.float32)                    # (T, 128) f32
    lane_axis = x.ndim - 1                                 # pltpu.roll: axis >= 0
    shifts = [1 << j for j in range(group_size.bit_length() - 1)]  # 1..G/2

    # ---- segmented order statistics (reduction phase, XLU rolls) ------------
    # Tree reduction over lane rotations: after combining with rotations of
    # 1, 2, 4, ..., G/2 (in that order), lane i holds the reduction of the
    # original lanes [i, i+G) (each original lane counted exactly once).  The
    # lane at every group start (offset 0 mod G) therefore covers exactly its
    # own group; other lanes are discarded by the broadcast matmul below.
    mn = x                                                 # running min
    m1 = x                                                 # running max
    m2 = jnp.full_like(x, -jnp.inf)                        # running 2nd-largest
    for s in shifts:
        r_mn = pltpu.roll(mn, shift=LANES - s, axis=lane_axis)  # lane i <- i+s
        r_m1 = pltpu.roll(m1, shift=LANES - s, axis=lane_axis)
        r_m2 = pltpu.roll(m2, shift=LANES - s, axis=lane_axis)
        mn = jnp.minimum(mn, r_mn)
        # top-2 combine of two disjoint multisets (handles duplicate maxima,
        # matching torch.kthvalue(k=G-1) semantics); must use pre-update m1.
        m2 = jnp.maximum(jnp.maximum(m2, r_m2), jnp.minimum(m1, r_m1))
        m1 = jnp.maximum(m1, r_m1)

    # ---- MXU segment broadcast (replaces 10 masked XLU rolls) ----------------
    # bmat[i, j] = 1 iff i == group_size * (j // group_size): output lane j
    # picks the value of its group-start lane.  Row-independent, so phantom /
    # masked tail rows cannot contaminate real rows.  HIGHEST precision makes
    # the 0/1-weighted f32 matmul bit-exact for finite inputs.
    bmat = bmat_ref[...]
    mn = jnp.dot(mn, bmat, preferred_element_type=jnp.float32,
                 precision=lax.Precision.HIGHEST)
    m2 = jnp.dot(m2, bmat, preferred_element_type=jnp.float32,
                 precision=lax.Precision.HIGHEST)

    # ---- scale / zero-point / fake quant ------------------------------------
    scale = (m2 - mn) * jnp.float32(1.0 / n_levels)        # exact: 2**-n_bits
    scale = jnp.where(scale == 0.0, jnp.float32(EPS), scale)
    if exact_divide:
        # Exact IEEE divides: round() matches the torch reference bit-for-bit.
        zero_point = mn / scale
        x_int = jnp.round(x / scale - zero_point)
    else:
        # Fast path (review): one approx reciprocal on the idle EUP slot; a
        # ~1-ULP error can flip a .5 rounding boundary vs the torch reference.
        inv = pl.reciprocal(scale, approx=True)
        zero_point = mn * inv
        x_int = jnp.round(x * inv - zero_point)
    x_int = jnp.clip(x_int, 0.0, n_levels - 1.0)
    o_ref[...] = ((x_int + zero_point) * scale).astype(o_ref.dtype)


def _choose_row_tile(rows):
    """Row-tile for the packed (rows, 128) view.

    <= 1024 rows per block (~0.5 MiB f32): double-buffered I/O plus the live
    f32 temporaries of the roll tree stay comfortably inside a 32 MiB scoped
    VMEM budget even on v7x (64 MiB physical).  Aims for ~16 grid steps so the
    v7x megacore (2 TensorCores) gets balanced "parallel" work; partial tail
    blocks are handled by Pallas masking (grid = cdiv(rows, tile)).
    """
    max_tile = 1024
    min_tile = 16                        # covers f32 (8) and bf16 (16) sublanes
    if rows <= min_tile:
        return rows                      # block == full row extent (legal)
    t = -(-rows // 16)                   # target ~16 grid steps
    t = -(-t // min_tile) * min_tile     # round up to a multiple of 16
    return max(min_tile, min(max_tile, t))


def _segment_broadcast_matrix(group_size):
    """(128,128) 0/1 matrix: column j selects its group-start row."""
    i = jnp.arange(LANES, dtype=jnp.int32)[:, None]
    j = jnp.arange(LANES, dtype=jnp.int32)[None, :]
    return (i == (j // group_size) * group_size).astype(jnp.float32)


def weight_pg_quantile_quantize(x, n_bits=8, group_size=32, exact_divide=True):
    """JAX/Pallas equivalent of WeightPGQuantileQuantizer(do_calibration=True)."""
    oc, ic = x.shape
    total = oc * ic
    assert total % group_size == 0
    n_levels = 2 ** n_bits

    # kthvalue ranks implied by quantile_scale / group_size.
    k_min = max(1, int((1 - QUANTILE_SCALE) * group_size))
    k_max = int(QUANTILE_SCALE * group_size)
    # Kernel specializes the (default) case k_min==1, k_max==group_size-1 and
    # power-of-two group sizes dividing the 128-lane vreg width.
    assert k_min == 1 and k_max == group_size - 1, (
        "kernel specializes the default quantile/group_size configuration")
    assert group_size >= 2 and LANES % group_size == 0
    assert group_size & (group_size - 1) == 0
    # TODO(synk): generic k-th order statistic (rank selection) for other
    # quantile_scale / group_size combinations.

    # Lane-dense packing: LANES//group_size groups per 128-lane row.  Common
    # case is a free row-major reshape; otherwise pad only up to a whole
    # 8-row x 128-lane slab (phantom groups, sliced off below) -- NOT to a full
    # tile multiple; the partial tail block is masked by Pallas instead.
    rows = -(-total // LANES)
    rows = -(-rows // 8) * 8             # keep MXU lhs sublane-aligned
    padded_len = rows * LANES

    flat = x.reshape(-1)
    if padded_len != total:
        flat = jnp.pad(flat, (0, padded_len - total))
    xg = flat.reshape(rows, LANES)

    tile = _choose_row_tile(rows)
    grid = (pl.cdiv(rows, tile),)
    bmat = _segment_broadcast_matrix(group_size)

    kernel = functools.partial(_pg_quantile_kernel,
                               n_levels=float(n_levels),
                               group_size=group_size,
                               exact_divide=exact_divide)
    out = pl.pallas_call(
        kernel,
        out_shape=jax.ShapeDtypeStruct((rows, LANES), x.dtype),
        grid_spec=pltpu.PrefetchScalarGridSpec(
            num_scalar_prefetch=0,
            grid=grid,
            in_specs=[
                pl.BlockSpec((tile, LANES), lambda i: (i, 0)),
                # constant block index -> stays VMEM-resident, no re-DMA
                pl.BlockSpec((LANES, LANES), lambda i: (0, 0)),
            ],
            out_specs=pl.BlockSpec((tile, LANES), lambda i: (i, 0)),
        ),
        compiler_params=pltpu.CompilerParams(
            dimension_semantics=("parallel",),       # megacore-shardable grid
            vmem_limit_bytes=32 * 1024 * 1024,       # raise for v5e's 16 MiB
        ),                                           # default; safe on v7x
    )(xg, bmat)

    out_flat = out.reshape(-1)
    if padded_len != total:
        out_flat = out_flat[:total]
    return out_flat.reshape(oc, ic)


def _reference(x, n_bits=8, group_size=32):
    """Pure-JAX reference mirroring the PyTorch module (f32 math)."""
    oc, ic = x.shape
    n_levels = 2 ** n_bits
    xg = x.reshape((oc * ic) // group_size, group_size).astype(jnp.float32)
    xs = jnp.sort(xg, axis=1)
    k_min = max(1, int((1 - QUANTILE_SCALE) * group_size))
    k_max = int(QUANTILE_SCALE * group_size)
    min_vals = xs[:, k_min - 1:k_min]
    max_vals = xs[:, k_max - 1:k_max]
    scale = (max_vals - min_vals) / n_levels
    scale = jnp.where(scale == 0, EPS, scale)
    zero_point = min_vals / scale
    x_int = jnp.clip(jnp.round(xg / scale - zero_point), 0, n_levels - 1)
    out = (x_int + zero_point) * scale
    return out.astype(x.dtype).reshape(oc, ic)


if __name__ == "__main__":
    key = jax.random.PRNGKey(0)
    k1, k2, k3 = jax.random.split(key, 3)

    # (a) small f32 weight, flat size a multiple of 128 (pure reshape path)
    x1 = jax.random.normal(k1, (64, 128), dtype=jnp.float32)
    y1 = jax.block_until_ready(weight_pg_quantile_quantize(x1))
    r1 = _reference(x1)
    assert y1.shape == x1.shape and y1.dtype == x1.dtype
    assert jnp.allclose(y1, r1, atol=1e-5, rtol=1e-5), "f32 mismatch"

    # (b) ragged size: 15 groups of 32 -> exercises the small zero-pad path
    x2 = jax.random.normal(k2, (12, 40), dtype=jnp.float32)
    y2 = jax.block_until_ready(weight_pg_quantile_quantize(x2))
    r2 = _reference(x2)
    assert jnp.allclose(y2, r2, atol=1e-5, rtol=1e-5), "ragged mismatch"

    # (c) bf16 weight passed through natively (no f32 HBM copy in the wrapper)
    x3 = jax.random.normal(k3, (48, 128), dtype=jnp.bfloat16)
    y3 = jax.block_until_ready(weight_pg_quantile_quantize(x3))
    r3 = _reference(x3)
    assert y3.dtype == jnp.bfloat16
    assert jnp.allclose(y3.astype(jnp.float32), r3.astype(jnp.float32),
                        atol=2e-2, rtol=2e-2), "bf16 mismatch"

    # (d) gated approx-reciprocal fast path: any divergence from the exact
    #     reference is at most one quantization step (a flipped .5 boundary).
    y4 = jax.block_until_ready(weight_pg_quantile_quantize(x1,
                                                           exact_divide=False))
    max_diff = float(jnp.max(jnp.abs(y4 - r1)))
    max_step = float((jnp.max(x1) - jnp.min(x1)) / 256.0)
    assert max_diff <= max_step + 1e-4, "approx-reciprocal path diverged"

    print("KERNEL_OK")
</pallas_src>

<mosaic_0001>
module attributes {stable_mosaic.version = 11 : i64} {
  func.func @_pg_quantile_kernel(%arg0: i32, %arg1: memref<16x128xf32, #tpu.memory_space<vmem>>, %arg2: memref<128x128xf32, #tpu.memory_space<vmem>>, %arg3: memref<16x128xf32, #tpu.memory_space<vmem>>) attributes {dimension_semantics = [#tpu.dimension_semantics<parallel>], iteration_bounds = array<i64: 4>, scalar_prefetch = 0 : i64, scratch_operands = 0 : i64, tpu.core_type = #tpu.core_type<tc>, window_params = [{transform_indices = @transform_0, window_bounds = array<i64: 16, 128>}, {pipeline_mode = #tpu.pipeline_mode<synchronous>, transform_indices = @transform_1, window_bounds = array<i64: 128, 128>}, {transform_indices = @transform_2, window_bounds = array<i64: 16, 128>}]} {
    %c0 = arith.constant 0 : index
    %c0_0 = arith.constant 0 : index
    %0 = vector.load %arg1[%c0, %c0_0] : memref<16x128xf32, #tpu.memory_space<vmem>>, vector<16x128xf32>
    %cst = arith.constant 0xFF800000 : f32
    %1 = vector.broadcast %cst : f32 to vector<16x128xf32>
    %c127_i32 = arith.constant 127 : i32
    %2 = tpu.dynamic_rotate %0 by %c127_i32 dim 1 : vector<16x128xf32>, i32 -> vector<16x128xf32>
    %c127_i32_1 = arith.constant 127 : i32
    %3 = tpu.dynamic_rotate %0 by %c127_i32_1 dim 1 : vector<16x128xf32>, i32 -> vector<16x128xf32>
    %c127_i32_2 = arith.constant 127 : i32
    %4 = tpu.dynamic_rotate %1 by %c127_i32_2 dim 1 : vector<16x128xf32>, i32 -> vector<16x128xf32>
    %5 = arith.minimumf %0, %2 : vector<16x128xf32>
    %6 = arith.maximumf %1, %4 : vector<16x128xf32>
    %7 = arith.minimumf %0, %3 : vector<16x128xf32>
    %8 = arith.maximumf %6, %7 : vector<16x128xf32>
    %9 = arith.maximumf %0, %3 : vector<16x128xf32>
    %c126_i32 = arith.constant 126 : i32
    %10 = tpu.dynamic_rotate %5 by %c126_i32 dim 1 : vector<16x128xf32>, i32 -> vector<16x128xf32>
    %c126_i32_3 = arith.constant 126 : i32
    %11 = tpu.dynamic_rotate %9 by %c126_i32_3 dim 1 : vector<16x128xf32>, i32 -> vector<16x128xf32>
    %c126_i32_4 = arith.constant 126 : i32
    %12 = tpu.dynamic_rotate %8 by %c126_i32_4 dim 1 : vector<16x128xf32>, i32 -> vector<16x128xf32>
    %13 = arith.minimumf %5, %10 : vector<16x128xf32>
    %14 = arith.maximumf %8, %12 : vector<16x128xf32>
    %15 = arith.minimumf %9, %11 : vector<16x128xf32>
    %16 = arith.maximumf %14, %15 : vector<16x128xf32>
    %17 = arith.maximumf %9, %11 : vector<16x128xf32>
    %c124_i32 = arith.constant 124 : i32
    %18 = tpu.dynamic_rotate %13 by %c124_i32 dim 1 : vector<16x128xf32>, i32 -> vector<16x128xf32>
    %c124_i32_5 = arith.constant 124 : i32
    %19 = tpu.dynamic_rotate %17 by %c124_i32_5 dim 1 : vector<16x128xf32>, i32 -> vector<16x128xf32>
    %c124_i32_6 = arith.constant 124 : i32
    %20 = tpu.dynamic_rotate %16 by %c124_i32_6 dim 1 : vector<16x128xf32>, i32 -> vector<16x128xf32>
    %21 = arith.minimumf %13, %18 : vector<16x128xf32>
    %22 = arith.maximumf %16, %20 : vector<16x128xf32>
    %23 = arith.minimumf %17, %19 : vector<16x128xf32>
    %24 = arith.maximumf %22, %23 : vector<16x128xf32>
    %25 = arith.maximumf %17, %19 : vector<16x128xf32>
    %c120_i32 = arith.constant 120 : i32
    %26 = tpu.dynamic_rotate %21 by %c120_i32 dim 1 : vector<16x128xf32>, i32 -> vector<16x128xf32>
    %c120_i32_7 = arith.constant 120 : i32
    %27 = tpu.dynamic_rotate %25 by %c120_i32_7 dim 1 : vector<16x128xf32>, i32 -> vector<16x128xf32>
    %c120_i32_8 = arith.constant 120 : i32
    %28 = tpu.dynamic_rotate %24 by %c120_i32_8 dim 1 : vector<16x128xf32>, i32 -> vector<16x128xf32>
    %29 = arith.minimumf %21, %26 : vector<16x128xf32>
    %30 = arith.maximumf %24, %28 : vector<16x128xf32>
    %31 = arith.minimumf %25, %27 : vector<16x128xf32>
    %32 = arith.maximumf %30, %31 : vector<16x128xf32>
    %33 = arith.maximumf %25, %27 : vector<16x128xf32>
    %c112_i32 = arith.constant 112 : i32
    %34 = tpu.dynamic_rotate %29 by %c112_i32 dim 1 : vector<16x128xf32>, i32 -> vector<16x128xf32>
    %c112_i32_9 = arith.constant 112 : i32
    %35 = tpu.dynamic_rotate %33 by %c112_i32_9 dim 1 : vector<16x128xf32>, i32 -> vector<16x128xf32>
    %c112_i32_10 = arith.constant 112 : i32
    %36 = tpu.dynamic_rotate %32 by %c112_i32_10 dim 1 : vector<16x128xf32>, i32 -> vector<16x128xf32>
    %37 = arith.minimumf %29, %34 : vector<16x128xf32>
    %38 = arith.maximumf %32, %36 : vector<16x128xf32>
    %39 = arith.minimumf %33, %35 : vector<16x128xf32>
    %40 = arith.maximumf %38, %39 : vector<16x128xf32>
    %c0_11 = arith.constant 0 : index
    %c0_12 = arith.constant 0 : index
    %41 = vector.load %arg2[%c0_11, %c0_12] : memref<128x128xf32, #tpu.memory_space<vmem>>, vector<128x128xf32>
    %cst_13 = arith.constant dense<0.000000e+00> : vector<16x128xf32>
    %42 = tpu.matmul %37, %41, %cst_13 {dimension_numbers = #tpu.dot_dimension_numbers<[1], [0], [0], [1], [0, 0, 1, 1], [], []>, precision = #tpu.contract_precision<fp32>} : vector<16x128xf32>, vector<128x128xf32>, vector<16x128xf32> -> vector<16x128xf32>
    %cst_14 = arith.constant dense<0.000000e+00> : vector<16x128xf32>
    %43 = tpu.matmul %40, %41, %cst_14 {dimension_numbers = #tpu.dot_dimension_numbers<[1], [0], [0], [1], [0, 0, 1, 1], [], []>, precision = #tpu.contract_precision<fp32>} : vector<16x128xf32>, vector<128x128xf32>, vector<16x128xf32> -> vector<16x128xf32>
    %44 = arith.subf %43, %42 : vector<16x128xf32>
    %cst_15 = arith.constant 3.906250e-03 : f32
    %45 = vector.broadcast %cst_15 : f32 to vector<16x128xf32>
    %46 = arith.mulf %44, %45 : vector<16x128xf32>
    %cst_16 = arith.constant 0.000000e+00 : f32
    %47 = vector.broadcast %cst_16 : f32 to vector<16x128xf32>
    %48 = arith.cmpf oeq, %46, %47 : vector<16x128xf32>
    %cst_17 = arith.constant 9.99999974E-5 : f32
    %49 = vector.broadcast %cst_17 : f32 to vector<16x128xf32>
    %50 = arith.select %48, %49, %46 : vector<16x128xi1>, vector<16x128xf32>
    %51 = arith.divf %42, %50 : vector<16x128xf32>
    %52 = arith.divf %0, %50 : vector<16x128xf32>
    %53 = arith.subf %52, %51 : vector<16x128xf32>
    %54 = math.roundeven %53 : vector<16x128xf32>
    %cst_18 = arith.constant 0.000000e+00 : f32
    %cst_19 = arith.constant 2.550000e+02 : f32
    %55 = vector.broadcast %cst_18 : f32 to vector<16x128xf32>
    %56 = arith.maximumf %55, %54 : vector<16x128xf32>
    %57 = vector.broadcast %cst_19 : f32 to vector<16x128xf32>
    %58 = arith.minimumf %57, %56 : vector<16x128xf32>
    %59 = arith.addf %58, %51 : vector<16x128xf32>
    %60 = arith.mulf %59, %50 : vector<16x128xf32>
    %c0_20 = arith.constant 0 : index
    %c0_21 = arith.constant 0 : index
    %61 = vector.load %arg3[%c0_20, %c0_21] : memref<16x128xf32, #tpu.memory_space<vmem>>, vector<16x128xf32>
    tpu.vector_store %arg3[%c0_20, %c0_21], %60 {strides = array<i32>} : memref<16x128xf32, #tpu.memory_space<vmem>>, vector<16x128xf32>,
    return
  }
  func.func @transform_0(%arg0: i32) -> (i32, i32) {
    %c0_i32 = arith.constant 0 : i32
    %c0_i32_0 = arith.constant 0 : i32
    return %arg0, %c0_i32 : i32, i32
  }
  func.func @transform_1(%arg0: i32) -> (i32, i32) {
    %c0_i32 = arith.constant 0 : i32
    %c0_i32_0 = arith.constant 0 : i32
    %c0_i32_1 = arith.constant 0 : i32
    return %c0_i32, %c0_i32_0 : i32, i32
  }
  func.func @transform_2(%arg0: i32) -> (i32, i32) {
    %c0_i32 = arith.constant 0 : i32
    %c0_i32_0 = arith.constant 0 : i32
    return %arg0, %c0_i32 : i32, i32
  }
}

</mosaic_0001>

<llo_original>
// kernel: tpu_custom_call.1
$region0: #{tpu_custom_call.1}
  #allocation0 [shape = 'u32[]', space=smem, size = 0x4, offset = 0x4, fixed_abs, tag = 'smem constant byte address 0x4 - core index']
  #allocation1 [shape = 'u32[144,128]{1,0:T(1,128)}', space=vmem, size = 0x12000, scoped, tag = 'internal scratch']
  %s0 = inlined_call_operand.hbm [shape: f32[64,128], index: 0, kind: input, shape index: {}]
  %s1 = inlined_call_operand.hbm [shape: f32[128,128], index: 1, kind: input, shape index: {}]
  %s2 = inlined_call_operand.hbm [shape: f32[64,128], index: 2, kind: output, shape index: {}]
  %s3 = sld [smem:[#allocation0]]
  $region49: #{tpu_custom_call.1} parent=0
    _
  %s5 = ssub.s32 1, %s3
  %s6 = scalar_select 0, %s5, %s3
  $region1: #{tpu_custom_call.1} parent=0
    #allocation2 [shape = 'u8[16384]{0}', space=vmem, size = 0x4000, scoped, tag = 'input window, operand 0']
    #allocation3 [shape = 's32[2]{0}', space=sflag, size = 0x8, scoped, tag = 'scoped memory for tpu_custom_call.1']
    #allocation4 [shape = 's32[2]{0}', space=sflag, size = 0x8, scoped, tag = 'scoped memory for tpu_custom_call.1']
    #allocation5 [shape = 'u8[65536]{0}', space=vmem, size = 0x10000, scoped, tag = 'input window, operand 1, single buffered']
    #allocation6 [shape = 's32[1]{0}', space=sflag, size = 0x4, scoped, tag = 'scoped memory for tpu_custom_call.1']
    #allocation7 [shape = 'u8[16384]{0}', space=vmem, size = 0x4000, scoped, tag = 'output window, operand 0']
    %7 = vsyncpa [#allocation3], 0
    %s8 = scalar_lea.sflag [#allocation3], 1
    %9 = vsyncpa %s8, 0
    %10 = vsyncpa [#allocation6], 0
    %11 = vsyncpa [#allocation4], 0
    %s12 = scalar_lea.sflag [#allocation4], 1
    %13 = vsyncpa %s12, 0
    loop: start=0, step=1, limit=6
    $region2: #{tpu_custom_call.1} parent=1 // loop_pre_header
      _
    $region3: #{tpu_custom_call.1} parent=1 // loop_header
      %s15 = sphi 0, %s19
      %p16 = scmp.ge.s32.totalorder %s15, 6
      %s25 = sphi 0, %s27
      %s28 = sphi 0, %s25
      %s29 = sphi 0, %s28
      %s45 = sphi 0, %s29
      %s49 = sphi 0, %s49
      %s51 = sphi 0, %s49
      %s52 = sphi 0, %s51
      %s66 = sphi 0, %s52
      %s72 = sphi 0, %s74
      %s75 = sphi 0, %s72
      %s76 = sphi 0, %s75
      %s92 = sphi 0, %s76
    $region4: #{tpu_custom_call.1} parent=1 // loop_header_branch
      %18 = sbr.rel (%p16) target = $region8
    $region5: #{tpu_custom_call.1} parent=1 // loop_body
      %s20 = ssub.s32 %s15, 1
      %s21 = ssub.s32 %s15, 2
      %s22 = sadd.s32 %s15, 1
      %s23 = ssub.s32 %s15, %s22
      %p24 = scmp.eq.s32.totalorder %s23, 0
      %s26 = sadd.s32 %s25, 1
      %s27 = scalar_select %p24, %s25, %s26
      %p30 = pneg %p24
      %p31 = scmp.eq.s32.totalorder %s15, 3
      %p32 = por %p30, %p31
      %p33 = scmp.ne.s32.totalorder %s25, %s28
      %p34 = scmp.eq.s32.totalorder %s15, 0
      %p35 = por %p33, %p34
      %p36 = scmp.ne.s32.totalorder %s25, %s28
      %p37 = scmp.eq.s32.totalorder %s20, 3
      %p38 = por %p36, %p37
      %p39 = scmp.ne.s32.totalorder %s28, %s29
      %p40 = scmp.eq.s32.totalorder %s20, 0
      %p41 = por %p39, %p40
      %p42 = scmp.ne.s32.totalorder %s28, %s29
      %p43 = scmp.eq.s32.totalorder %s21, 3
      %p44 = por %p42, %p43
      %p46 = scmp.ne.s32.totalorder %s29, %s45
      %p47 = scmp.eq.s32.totalorder %s21, 0
      %p48 = por %p46, %p47
      %s50 = sadd.s32 %s49, 1
      %p53 = scmp.eq.s32.totalorder %s15, 3
      %p54 = scmp.ne.s32.totalorder %s49, %s51
      %p55 = scmp.eq.s32.totalorder %s15, 0
      %p56 = por %p54, %p55
      %p57 = scmp.ne.s32.totalorder %s49, %s51
      %p58 = scmp.eq.s32.totalorder %s20, 3
      %p59 = por %p57, %p58
      %p60 = scmp.ne.s32.totalorder %s51, %s52
      %p61 = scmp.eq.s32.totalorder %s20, 0
      %p62 = por %p60, %p61
      %p63 = scmp.ne.s32.totalorder %s51, %s52
      %p64 = scmp.eq.s32.totalorder %s21, 3
      %p65 = por %p63, %p64
      %p67 = scmp.ne.s32.totalorder %s52, %s66
      %p68 = scmp.eq.s32.totalorder %s21, 0
      %p69 = por %p67, %p68
      %s70 = ssub.s32 %s15, %s22
      %p71 = scmp.eq.s32.totalorder %s70, 0
      %s73 = sadd.s32 %s72, 1
      %s74 = scalar_select %p71, %s72, %s73
      %p77 = pneg %p71
      %p78 = scmp.eq.s32.totalorder %s15, 3
      %p79 = por %p77, %p78
      %p80 = scmp.ne.s32.totalorder %s72, %s75
      %p81 = scmp.eq.s32.totalorder %s15, 0
      %p82 = por %p80, %p81
      %p83 = scmp.ne.s32.totalorder %s72, %s75
      %p84 = scmp.eq.s32.totalorder %s20, 3
      %p85 = por %p83, %p84
      %p86 = scmp.ne.s32.totalorder %s75, %s76
      %p87 = scmp.eq.s32.totalorder %s20, 0
      %p88 = por %p86, %p87
      %p89 = scmp.ne.s32.totalorder %s75, %s76
      %p90 = scmp.eq.s32.totalorder %s21, 3
      %p91 = por %p89, %p90
      %p93 = scmp.ne.s32.totalorder %s76, %s92
      %p94 = scmp.eq.s32.totalorder %s21, 0
      %p95 = por %p93, %p94
      %p96 = scmp.le.s32.totalorder 1, %s15
      %p97 = scmp.lt.s32.totalorder %s15, 5
      %p98 = pnand %p96, %p97
      %p99 = pneg %p98
      // Predicated region
      $region9: #{tpu_custom_call.1} parent=5 // pred_check
        _
      $region10: #{tpu_custom_call.1} parent=5 // pred_check_branch
        %101 = sbr.rel (%p98) target = $region12
      $region11: #{tpu_custom_call.1} parent=5 // pred_region
        %s102 = ssub.s32 %s15, 1
        // Predicated region
        $region13: #{tpu_custom_call.1} parent=11 // pred_check
          %p103 = pneg %p62
        $region14: #{tpu_custom_call.1} parent=11 // pred_check_branch
          %105 = sbr.rel (%p103) target = $region16
        $region15: #{tpu_custom_call.1} parent=11 // pred_region
          %s107 = ssub.s32 2048, 2048
          %108 = vsyncadd [#allocation6], %s107
          %s109 = sshll.u32 [#allocation5], 4
          %s110 = int_to_ptr.vmem [resolvable:$true] %s109
          %115 = dma.hbm_to_vmem [thread:$0]  %s1, 2048, %s110, [#allocation6], 128, 128, 8
        $region16: #{tpu_custom_call.1} parent=11 // pred_fallthru
          _
      $region12: #{tpu_custom_call.1} parent=5 // pred_fallthru
        _
      %p116 = scmp.lt.s32.totalorder %s15, 4
      // Predicated region
      $region17: #{tpu_custom_call.1} parent=5 // pred_check
        %p117 = pneg %p116
      $region18: #{tpu_custom_call.1} parent=5 // pred_check_branch
        %119 = sbr.rel (%p117) target = $region20
      $region19: #{tpu_custom_call.1} parent=5 // pred_region
        // Predicated region
        $region21: #{tpu_custom_call.1} parent=19 // pred_check
          %p120 = pneg %p35
        $region22: #{tpu_custom_call.1} parent=19 // pred_check_branch
          %122 = sbr.rel (%p120) target = $region24
        $region23: #{tpu_custom_call.1} parent=19 // pred_region
          %s123 = sand.u32 %s25, 1
          %s124 = scalar_lea.sflag [#allocation3], %s123
          %s125 = sand.u32 %s25, 1
          %s126 = smul.addr %s125, 16
          %s127 = scalar_lea.vmem [#allocation2], %s126
          %s128 = smul.u32 2, %s15
          %s130 = ssub.s32 256, 256
          %131 = vsyncadd %s124, %s130
          %s132 = smul.addr %s128, 128
          %s133 = scalar_lea.hbm %s0, %s132
          %s134 = sshll.u32 %s127, 4
          %s135 = int_to_ptr.vmem [resolvable:$true] %s134
          %140 = dma.hbm_to_vmem [thread:$0]  %s133, 256, %s135, %s124, 128, 128, 8
        $region24: #{tpu_custom_call.1} parent=19 // pred_fallthru
          _
      $region20: #{tpu_custom_call.1} parent=5 // pred_fallthru
        _
      %p141 = scmp.le.s32.totalorder 1, %s15
      %p142 = scmp.lt.s32.totalorder %s15, 5
      %p143 = pnand %p141, %p142
      %p144 = pneg %p143
      // Predicated region
      $region25: #{tpu_custom_call.1} parent=5 // pred_check
        _
      $region26: #{tpu_custom_call.1} parent=5 // pred_check_branch
        %146 = sbr.rel (%p143) target = $region28
      $region27: #{tpu_custom_call.1} parent=5 // pred_region
        %s147 = ssub.s32 %s15, 1
        %s148 = sand.u32 %s28, 1
        %s149 = scalar_lea.sflag [#allocation3], %s148
        %s150 = sand.u32 %s28, 1
        %s151 = smul.addr %s150, 16
        %s152 = scalar_lea.vmem [#allocation2], %s151
        // Predicated region
        $region29: #{tpu_custom_call.1} parent=27 // pred_check
          %p153 = pneg %p41
        $region30: #{tpu_custom_call.1} parent=27 // pred_check_branch
          %155 = sbr.rel (%p153) target = $region32
        $region31: #{tpu_custom_call.1} parent=27 // pred_region
          %156 = dma.done %s149, 256
        $region32: #{tpu_custom_call.1} parent=27 // pred_fallthru
          _
        // Predicated region
        $region33: #{tpu_custom_call.1} parent=27 // pred_check
          %p157 = pneg %p62
        $region34: #{tpu_custom_call.1} parent=27 // pred_check_branch
          %159 = sbr.rel (%p157) target = $region36
        $region35: #{tpu_custom_call.1} parent=27 // pred_region
          %160 = dma.done [#allocation6], 2048
        $region36: #{tpu_custom_call.1} parent=27 // pred_fallthru
          _
        %s161 = sand.u32 %s28, 1
        %s162 = scalar_lea.sflag [#allocation3], %s161
        %s163 = sand.u32 %s28, 1
        %s164 = smul.addr %s163, 16
        %s165 = scalar_lea.vmem [#allocation2], %s164
        %p166 = pneg %p41
        %p167 = pneg %p38
        %p168 = pneg %p62
        %p169 = pneg %p59
        %p170 = pneg %p88
        %p171 = pneg %p85
        %s172 = sand.u32 %s75, 1
        %s173 = scalar_lea.sflag [#allocation4], %s172
        %s174 = sand.u32 %s75, 1
        %s175 = smul.addr %s174, 16
        %s176 = scalar_lea.vmem [#allocation7], %s175
        %s177 = smul.u32 2, %s20
        %s178 = smul.u32 2, %s20
        %v179 = vld [vmem:[%s152] sm:$0xff]
        %v180 = vld [vmem:[%s152 + $0x8] sm:$0xff]
        %181 = vrot.lane.b32.xlu0 %v179, 127
        %v182 = vpop.permute.xlu0 %181
        %183 = vrot.lane.b32.xlu0 %v180, 127
        %v184 = vpop.permute.xlu0 %183
        %185 = vrot.lane.b32.xlu0 -inf, 127
        %v186 = vpop.permute.xlu0 %185
        %v187 = vmin.f32 %v179, %v182
        %v188 = vmin.f32 %v180, %v184
        %v189 = vmax.f32 %v186, %v187
        %v190 = vmax.f32 %v186, %v188
        %v191 = vmax.f32 %v179, %v182
        %v192 = vmax.f32 %v180, %v184
        %193 = vrot.lane.b32.xlu0 %v187, 126
        %v194 = vpop.permute.xlu0 %193
        %195 = vrot.lane.b32.xlu0 %v188, 126
        %v196 = vpop.permute.xlu0 %195
        %197 = vrot.lane.b32.xlu0 %v191, 126
        %v198 = vpop.permute.xlu0 %197
        %199 = vrot.lane.b32.xlu0 %v192, 126
        %v200 = vpop.permute.xlu0 %199
        %201 = vrot.lane.b32.xlu0 %v189, 126
        %v202 = vpop.permute.xlu0 %201
        %203 = vrot.lane.b32.xlu0 %v190, 126
        %v204 = vpop.permute.xlu0 %203
        %v205 = vmin.f32 %v187, %v194
        %v206 = vmin.f32 %v188, %v196
        %v207 = vmax.f32 %v189, %v202
        %v208 = vmax.f32 %v190, %v204
        %v209 = vmin.f32 %v191, %v198
        %v210 = vmin.f32 %v192, %v200
        %v211 = vmax.f32 %v207, %v209
        %v212 = vmax.f32 %v208, %v210
        %v213 = vmax.f32 %v191, %v198
        %v214 = vmax.f32 %v192, %v200
        %215 = vrot.lane.b32.xlu0 %v205, 124
        %v216 = vpop.permute.xlu0 %215
        %217 = vrot.lane.b32.xlu0 %v206, 124
        %v218 = vpop.permute.xlu0 %217
        %219 = vrot.lane.b32.xlu0 %v213, 124
        %v220 = vpop.permute.xlu0 %219
        %221 = vrot.lane.b32.xlu0 %v214, 124
        %v222 = vpop.permute.xlu0 %221
        %223 = vrot.lane.b32.xlu0 %v211, 124
        %v224 = vpop.permute.xlu0 %223
        %225 = vrot.lane.b32.xlu0 %v212, 124
        %v226 = vpop.permute.xlu0 %225
        %v227 = vmin.f32 %v205, %v216
        %v228 = vmin.f32 %v206, %v218
        %v229 = vmax.f32 %v211, %v224
        %v230 = vmax.f32 %v212, %v226
        %v231 = vmin.f32 %v213, %v220
        %v232 = vmin.f32 %v214, %v222
        %v233 = vmax.f32 %v229, %v231
        %v234 = vmax.f32 %v230, %v232
        %v235 = vmax.f32 %v213, %v220
        %v236 = vmax.f32 %v214, %v222
        %237 = vrot.lane.b32.xlu0 %v227, 120
        %v238 = vpop.permute.xlu0 %237
        %239 = vrot.lane.b32.xlu0 %v228, 120
        %v240 = vpop.permute.xlu0 %239
        %241 = vrot.lane.b32.xlu0 %v235, 120
        %v242 = vpop.permute.xlu0 %241
        %243 = vrot.lane.b32.xlu0 %v236, 120
        %v244 = vpop.permute.xlu0 %243
        %245 = vrot.lane.b32.xlu0 %v233, 120
        %v246 = vpop.permute.xlu0 %245
        %247 = vrot.lane.b32.xlu0 %v234, 120
        %v248 = vpop.permute.xlu0 %247
        %v249 = vmin.f32 %v227, %v238
        %v250 = vmin.f32 %v228, %v240
        %v251 = vmax.f32 %v233, %v246
        %v252 = vmax.f32 %v234, %v248
        %v253 = vmin.f32 %v235, %v242
        %v254 = vmin.f32 %v236, %v244
        %v255 = vmax.f32 %v251, %v253
        %v256 = vmax.f32 %v252, %v254
        %v257 = vmax.f32 %v235, %v242
        %v258 = vmax.f32 %v236, %v244
        %259 = vrot.lane.b32.xlu0 %v249, 112
        %v260 = vpop.permute.xlu0 %259
        %261 = vrot.lane.b32.xlu0 %v250, 112
        %v262 = vpop.permute.xlu0 %261
        %263 = vrot.lane.b32.xlu0 %v257, 112
        %v264 = vpop.permute.xlu0 %263
        %265 = vrot.lane.b32.xlu0 %v258, 112
        %v266 = vpop.permute.xlu0 %265
        %267 = vrot.lane.b32.xlu0 %v255, 112
        %v268 = vpop.permute.xlu0 %267
        %269 = vrot.lane.b32.xlu0 %v256, 112
        %v270 = vpop.permute.xlu0 %269
        %v271 = vmin.f32 %v249, %v260
        %v272 = vmin.f32 %v250, %v262
        %v273 = vmax.f32 %v255, %v268
        %v274 = vmax.f32 %v256, %v270
        %v275 = vmin.f32 %v257, %v264
        %v276 = vmin.f32 %v258, %v266
        %v277 = vmax.f32 %v273, %v275
        %v278 = vmax.f32 %v274, %v276
        %v279 = vld [vmem:[#allocation5] sm:$0xff]
        %v280 = vld [vmem:[#allocation5 + $0x8] sm:$0xff]
        %v281 = vld [vmem:[#allocation5 + $0x10] sm:$0xff]
        %v282 = vld [vmem:[#allocation5 + $0x18] sm:$0xff]
        %v283 = vld [vmem:[#allocation5 + $0x20] sm:$0xff]
        %v284 = vld [vmem:[#allocation5 + $0x28] sm:$0xff]
        %v285 = vld [vmem:[#allocation5 + $0x30] sm:$0xff]
        %v286 = vld [vmem:[#allocation5 + $0x38] sm:$0xff]
        %v287 = vld [vmem:[#allocation5 + $0x40] sm:$0xff]
        %v288 = vld [vmem:[#allocation5 + $0x48] sm:$0xff]
        %v289 = vld [vmem:[#allocation5 + $0x50] sm:$0xff]
        %v290 = vld [vmem:[#allocation5 + $0x58] sm:$0xff]
        %v291 = vld [vmem:[#allocation5 + $0x60] sm:$0xff]
        %v292 = vld [vmem:[#allocation5 + $0x68] sm:$0xff]
        %v293 = vld [vmem:[#allocation5 + $0x70] sm:$0xff]
        %v294 = vld [vmem:[#allocation5 + $0x78] sm:$0xff]
        %295 = vmatprep.subr.mxu0 0.0
        %v296 = vand.u32 %v279, 4294901760
        %297 = vmatpush1.msra.mxu0 %v296
        %298 = vmatprep.subr.mxu0 0.0
        %v299 = vand.u32 %v280, 4294901760
        %300 = vmatpush1.msra.mxu0 %v299
        %301 = vmatprep.subr.mxu0 0.0
        %v302 = vand.u32 %v281, 4294901760
        %303 = vmatpush1.msra.mxu0 %v302
        %304 = vmatprep.subr.mxu0 0.0
        %v305 = vand.u32 %v282, 4294901760
        %306 = vmatpush1.msra.mxu0 %v305
        %307 = vmatprep.subr.mxu0 0.0
        %v308 = vand.u32 %v283, 4294901760
        %309 = vmatpush1.msra.mxu0 %v308
        %310 = vmatprep.subr.mxu0 0.0
        %v311 = vand.u32 %v284, 4294901760
        %312 = vmatpush1.msra.mxu0 %v311
        %313 = vmatprep.subr.mxu0 0.0
        %v314 = vand.u32 %v285, 4294901760
        %315 = vmatpush1.msra.mxu0 %v314
        %316 = vmatprep.subr.mxu0 0.0
        %v317 = vand.u32 %v286, 4294901760
        %318 = vmatpush1.msra.mxu0 %v317
        %319 = vmatprep.subr.mxu0 0.0
        %v320 = vand.u32 %v287, 4294901760
        %321 = vmatpush1.msra.mxu0 %v320
        %322 = vmatprep.subr.mxu0 0.0
        %v323 = vand.u32 %v288, 4294901760
        %324 = vmatpush1.msra.mxu0 %v323
        %325 = vmatprep.subr.mxu0 0.0
        %v326 = vand.u32 %v289, 4294901760
        %327 = vmatpush1.msra.mxu0 %v326
        %328 = vmatprep.subr.mxu0 0.0
        %v329 = vand.u32 %v290, 4294901760
        %330 = vmatpush1.msra.mxu0 %v329
        %331 = vmatprep.subr.mxu0 0.0
        %v332 = vand.u32 %v291, 4294901760
        %333 = vmatpush1.msra.mxu0 %v332
        %334 = vmatprep.subr.mxu0 0.0
        %v335 = vand.u32 %v292, 4294901760
        %336 = vmatpush1.msra.mxu0 %v335
        %337 = vmatprep.subr.mxu0 0.0
        %v338 = vand.u32 %v293, 4294901760
        %339 = vmatpush1.msra.mxu0 %v338
        %340 = vmatprep.subr.mxu0 0.0
        %v341 = vand.u32 %v294, 4294901760
        %342 = vmatpush1.msra.mxu0 %v341
        %343 = vmatprep.subr.mxu0 0.0
        %344 = vmatpush1.msra.mxu0 0.0
        %345 = vmatprep.subr.mxu0 0.0
        %346 = vmatpush1.msra.mxu0 0.0
        %347 = vmatprep.subr.mxu0 0.0
        %348 = vmatpush1.msra.mxu0 0.0
        %349 = vmatprep.subr.mxu0 0.0
        %350 = vmatpush1.msra.mxu0 0.0
        %351 = vmatprep.subr.mxu0 0.0
        %352 = vmatpush1.msra.mxu0 0.0
        %353 = vmatprep.subr.mxu0 0.0
        %354 = vmatpush1.msra.mxu0 0.0
        %355 = vmatprep.subr.mxu0 0.0
        %356 = vmatpush1.msra.mxu0 0.0
        %357 = vmatprep.subr.mxu0 0.0
        %358 = vmatpush1.msra.mxu0 0.0
        %359 = vmatprep.subr.mxu0 0.0
        %360 = vmatpush1.msra.mxu0 0.0
        %361 = vmatprep.subr.mxu0 0.0
        %362 = vmatpush1.msra.mxu0 0.0
        %363 = vmatprep.subr.mxu0 0.0
        %364 = vmatpush1.msra.mxu0 0.0
        %365 = vmatprep.subr.mxu0 0.0
        %366 = vmatpush1.msra.mxu0 0.0
        %367 = vmatprep.subr.mxu0 0.0
        %368 = vmatpush1.msra.mxu0 0.0
        %369 = vmatprep.subr.mxu0 0.0
        %370 = vmatpush1.msra.mxu0 0.0
        %371 = vmatprep.subr.mxu0 0.0
        %372 = vmatpush1.msra.mxu0 0.0
        %373 = vmatprep.subr.mxu0 0.0
        %374 = vmatpush1.msra.mxu0 0.0
        %375 = vmatprep.mubr.f32.mxu0 0.0
        %v376 = vand.u32 %v271, 4294901760
        %v377 = vsub.f32 %v271, %v376
        %v378 = vand.u32 %v377, 4294901760
        %v379 = vsub.f32 %v377, %v378
        %v380 = vand.u32 %v379, 4294901760
        %381 = vmatmul.mubr.f32.gmra.mrb[0].mxu0 %v380
        %v382 = vpop.f32.mrb[0].mxu0
        %v383 = vadd.f32 0.0, %v382
        %v384 = vpop.f32.mrb[0].mxu0
        %385 = vmatprep.mubr.f32.mxu0 0.0
        %v386 = vand.u32 %v272, 4294901760
        %v387 = vsub.f32 %v272, %v386
        %v388 = vand.u32 %v387, 4294901760
        %v389 = vsub.f32 %v387, %v388
        %v390 = vand.u32 %v389, 4294901760
        %391 = vmatmul.mubr.f32.gmra.mrb[0].mxu0 %v390
        %v392 = vpop.f32.mrb[0].mxu0
        %v393 = vadd.f32 0.0, %v392
        %v394 = vpop.f32.mrb[0].mxu0
        %395 = vdwg.mxu0
        %396 = vmatprep.subr.mxu0 0.0
        %v397 = vand.u32 %v279, 4294901760
        %v398 = vsub.f32 %v279, %v397
        %v399 = vand.u32 %v398, 4294901760
        %v400 = vsub.f32 %v398, %v399
        %v401 = vand.u32 %v400, 4294901760
        %402 = vmatpush1.msra.mxu0 %v401
        %403 = vmatprep.subr.mxu0 0.0
        %v404 = vand.u32 %v280, 4294901760
        %v405 = vsub.f32 %v280, %v404
        %v406 = vand.u32 %v405, 4294901760
        %v407 = vsub.f32 %v405, %v406
        %v408 = vand.u32 %v407, 4294901760
        %409 = vmatpush1.msra.mxu0 %v408
        %410 = vmatprep.subr.mxu0 0.0
        %v411 = vand.u32 %v281, 4294901760
        %v412 = vsub.f32 %v281, %v411
        %v413 = vand.u32 %v412, 4294901760
        %v414 = vsub.f32 %v412, %v413
        %v415 = vand.u32 %v414, 4294901760
        %416 = vmatpush1.msra.mxu0 %v415
        %417 = vmatprep.subr.mxu0 0.0
        %v418 = vand.u32 %v282, 4294901760
        %v419 = vsub.f32 %v282, %v418
        %v420 = vand.u32 %v419, 4294901760
        %v421 = vsub.f32 %v419, %v420
        %v422 = vand.u32 %v421, 4294901760
        %423 = vmatpush1.msra.mxu0 %v422
        %424 = vmatprep.subr.mxu0 0.0
        %v425 = vand.u32 %v283, 4294901760
        %v426 = vsub.f32 %v283, %v425
        %v427 = vand.u32 %v426, 4294901760
        %v428 = vsub.f32 %v426, %v427
        %v429 = vand.u32 %v428, 4294901760
        %430 = vmatpush1.msra.mxu0 %v429
        %431 = vmatprep.subr.mxu0 0.0
        %v432 = vand.u32 %v284, 4294901760
        %v433 = vsub.f32 %v284, %v432
        %v434 = vand.u32 %v433, 4294901760
        %v435 = vsub.f32 %v433, %v434
        %v436 = vand.u32 %v435, 4294901760
        %437 = vmatpush1.msra.mxu0 %v436
        %438 = vmatprep.subr.mxu0 0.0
        %v439 = vand.u32 %v285, 4294901760
        %v440 = vsub.f32 %v285, %v439
        %v441 = vand.u32 %v440, 4294901760
        %v442 = vsub.f32 %v440, %v441
        %v443 = vand.u32 %v442, 4294901760
        %444 = vmatpush1.msra.mxu0 %v443
        %445 = vmatprep.subr.mxu0 0.0
        %v446 = vand.u32 %v286, 4294901760
        %v447 = vsub.f32 %v286, %v446
        %v448 = vand.u32 %v447, 4294901760
        %v449 = vsub.f32 %v447, %v448
        %v450 = vand.u32 %v449, 4294901760
        %451 = vmatpush1.msra.mxu0 %v450
        %452 = vmatprep.subr.mxu0 0.0
        %v453 = vand.u32 %v287, 4294901760
        %v454 = vsub.f32 %v287, %v453
        %v455 = vand.u32 %v454, 4294901760
        %v456 = vsub.f32 %v454, %v455
        %v457 = vand.u32 %v456, 4294901760
        %458 = vmatpush1.msra.mxu0 %v457
        %459 = vmatprep.subr.mxu0 0.0
        %v460 = vand.u32 %v288, 4294901760
        %v461 = vsub.f32 %v288, %v460
        %v462 = vand.u32 %v461, 4294901760
        %v463 = vsub.f32 %v461, %v462
        %v464 = vand.u32 %v463, 4294901760
        %465 = vmatpush1.msra.mxu0 %v464
        %466 = vmatprep.subr.mxu0 0.0
        %v467 = vand.u32 %v289, 4294901760
        %v468 = vsub.f32 %v289, %v467
        %v469 = vand.u32 %v468, 4294901760
        %v470 = vsub.f32 %v468, %v469
        %v471 = vand.u32 %v470, 4294901760
        %472 = vmatpush1.msra.mxu0 %v471
        %473 = vmatprep.subr.mxu0 0.0
        %v474 = vand.u32 %v290, 4294901760
        %v475 = vsub.f32 %v290, %v474
        %v476 = vand.u32 %v475, 4294901760
        %v477 = vsub.f32 %v475, %v476
        %v478 = vand.u32 %v477, 4294901760
        %479 = vmatpush1.msra.mxu0 %v478
        %480 = vmatprep.subr.mxu0 0.0
        %v481 = vand.u32 %v291, 4294901760
        %v482 = vsub.f32 %v291, %v481
        %v483 = vand.u32 %v482, 4294901760
        %v484 = vsub.f32 %v482, %v483
        %v485 = vand.u32 %v484, 4294901760
        %486 = vmatpush1.msra.mxu0 %v485
        %487 = vmatprep.subr.mxu0 0.0
        %v488 = vand.u32 %v292, 4294901760
        %v489 = vsub.f32 %v292, %v488
        %v490 = vand.u32 %v489, 4294901760
        %v491 = vsub.f32 %v489, %v490
        %v492 = vand.u32 %v491, 4294901760
        %493 = vmatpush1.msra.mxu0 %v492
        %494 = vmatprep.subr.mxu0 0.0
        %v495 = vand.u32 %v293, 4294901760
        %v496 = vsub.f32 %v293, %v495
        %v497 = vand.u32 %v496, 4294901760
        %v498 = vsub.f32 %v496, %v497
        %v499 = vand.u32 %v498, 4294901760
        %500 = vmatpush1.msra.mxu0 %v499
        %501 = vmatprep.subr.mxu0 0.0
        %v502 = vand.u32 %v294, 4294901760
        %v503 = vsub.f32 %v294, %v502
        %v504 = vand.u32 %v503, 4294901760
        %v505 = vsub.f32 %v503, %v504
        %v506 = vand.u32 %v505, 4294901760
        %507 = vmatpush1.msra.mxu0 %v506
        %508 = vmatprep.subr.mxu0 0.0
        %509 = vmatpush1.msra.mxu0 0.0
        %510 = vmatprep.subr.mxu0 0.0
        %511 = vmatpush1.msra.mxu0 0.0
        %512 = vmatprep.subr.mxu0 0.0
        %513 = vmatpush1.msra.mxu0 0.0
        %514 = vmatprep.subr.mxu0 0.0
        %515 = vmatpush1.msra.mxu0 0.0
        %516 = vmatprep.subr.mxu0 0.0
        %517 = vmatpush1.msra.mxu0 0.0
        %518 = vmatprep.subr.mxu0 0.0
        %519 = vmatpush1.msra.mxu0 0.0
        %520 = vmatprep.subr.mxu0 0.0
        %521 = vmatpush1.msra.mxu0 0.0
        %522 = vmatprep.subr.mxu0 0.0
        %523 = vmatpush1.msra.mxu0 0.0
        %524 = vmatprep.subr.mxu0 0.0
        %525 = vmatpush1.msra.mxu0 0.0
        %526 = vmatprep.subr.mxu0 0.0
        %527 = vmatpush1.msra.mxu0 0.0
        %528 = vmatprep.subr.mxu0 0.0
        %529 = vmatpush1.msra.mxu0 0.0
        %530 = vmatprep.subr.mxu0 0.0
        %531 = vmatpush1.msra.mxu0 0.0
        %532 = vmatprep.subr.mxu0 0.0
        %533 = vmatpush1.msra.mxu0 0.0
        %534 = vmatprep.subr.mxu0 0.0
        %535 = vmatpush1.msra.mxu0 0.0
        %536 = vmatprep.subr.mxu0 0.0
        %537 = vmatpush1.msra.mxu0 0.0
        %538 = vmatprep.subr.mxu0 0.0
        %539 = vmatpush1.msra.mxu0 0.0
        %540 = vmatprep.mubr.f32.mxu0 0.0
        %v541 = vand.u32 %v271, 4294901760
        %542 = vmatmul.mubr.f32.gmra.mrb[0].mxu0 %v541
        %v543 = vpop.f32.mrb[0].mxu0
        %v544 = vadd.f32 %v383, %v543
        %v545 = vpop.f32.mrb[0].mxu0
        %546 = vmatprep.mubr.f32.mxu0 0.0
        %v547 = vand.u32 %v272, 4294901760
        %548 = vmatmul.mubr.f32.gmra.mrb[0].mxu0 %v547
        %v549 = vpop.f32.mrb[0].mxu0
        %v550 = vadd.f32 %v393, %v549
        %v551 = vpop.f32.mrb[0].mxu0
        %552 = vdwg.mxu0
        %553 = vmatprep.subr.mxu0 0.0
        %v554 = vand.u32 %v279, 4294901760
        %v555 = vsub.f32 %v279, %v554
        %556 = vmatpush1.msra.mxu0 %v555
        %557 = vmatprep.subr.mxu0 0.0
        %v558 = vand.u32 %v280, 4294901760
        %v559 = vsub.f32 %v280, %v558
        %560 = vmatpush1.msra.mxu0 %v559
        %561 = vmatprep.subr.mxu0 0.0
        %v562 = vand.u32 %v281, 4294901760
        %v563 = vsub.f32 %v281, %v562
        %564 = vmatpush1.msra.mxu0 %v563
        %565 = vmatprep.subr.mxu0 0.0
        %v566 = vand.u32 %v282, 4294901760
        %v567 = vsub.f32 %v282, %v566
        %568 = vmatpush1.msra.mxu0 %v567
        %569 = vmatprep.subr.mxu0 0.0
        %v570 = vand.u32 %v283, 4294901760
        %v571 = vsub.f32 %v283, %v570
        %572 = vmatpush1.msra.mxu0 %v571
        %573 = vmatprep.subr.mxu0 0.0
        %v574 = vand.u32 %v284, 4294901760
        %v575 = vsub.f32 %v284, %v574
        %576 = vmatpush1.msra.mxu0 %v575
        %577 = vmatprep.subr.mxu0 0.0
        %v578 = vand.u32 %v285, 4294901760
        %v579 = vsub.f32 %v285, %v578
        %580 = vmatpush1.msra.mxu0 %v579
        %581 = vmatprep.subr.mxu0 0.0
        %v582 = vand.u32 %v286, 4294901760
        %v583 = vsub.f32 %v286, %v582
        %584 = vmatpush1.msra.mxu0 %v583
        %585 = vmatprep.subr.mxu0 0.0
        %v586 = vand.u32 %v287, 4294901760
        %v587 = vsub.f32 %v287, %v586
        %588 = vmatpush1.msra.mxu0 %v587
        %589 = vmatprep.subr.mxu0 0.0
        %v590 = vand.u32 %v288, 4294901760
        %v591 = vsub.f32 %v288, %v590
        %592 = vmatpush1.msra.mxu0 %v591
        %593 = vmatprep.subr.mxu0 0.0
        %v594 = vand.u32 %v289, 4294901760
        %v595 = vsub.f32 %v289, %v594
        %596 = vmatpush1.msra.mxu0 %v595
        %597 = vmatprep.subr.mxu0 0.0
        %v598 = vand.u32 %v290, 4294901760
        %v599 = vsub.f32 %v290, %v598
        %600 = vmatpush1.msra.mxu0 %v599
        %601 = vmatprep.subr.mxu0 0.0
        %v602 = vand.u32 %v291, 4294901760
        %v603 = vsub.f32 %v291, %v602
        %604 = vmatpush1.msra.mxu0 %v603
        %605 = vmatprep.subr.mxu0 0.0
        %v606 = vand.u32 %v292, 4294901760
        %v607 = vsub.f32 %v292, %v606
        %608 = vmatpush1.msra.mxu0 %v607
        %609 = vmatprep.subr.mxu0 0.0
        %v610 = vand.u32 %v293, 4294901760
        %v611 = vsub.f32 %v293, %v610
        %612 = vmatpush1.msra.mxu0 %v611
        %613 = vmatprep.subr.mxu0 0.0
        %v614 = vand.u32 %v294, 4294901760
        %v615 = vsub.f32 %v294, %v614
        %616 = vmatpush1.msra.mxu0 %v615
        %617 = vmatprep.subr.mxu0 0.0
        %618 = vmatpush1.msra.mxu0 0.0
        %619 = vmatprep.subr.mxu0 0.0
        %620 = vmatpush1.msra.mxu0 0.0
        %621 = vmatprep.subr.mxu0 0.0
        %622 = vmatpush1.msra.mxu0 0.0
        %623 = vmatprep.subr.mxu0 0.0
        %624 = vmatpush1.msra.mxu0 0.0
        %625 = vmatprep.subr.mxu0 0.0
        %626 = vmatpush1.msra.mxu0 0.0
        %627 = vmatprep.subr.mxu0 0.0
        %628 = vmatpush1.msra.mxu0 0.0
        %629 = vmatprep.subr.mxu0 0.0
        %630 = vmatpush1.msra.mxu0 0.0
        %631 = vmatprep.subr.mxu0 0.0
        %632 = vmatpush1.msra.mxu0 0.0
        %633 = vmatprep.subr.mxu0 0.0
        %634 = vmatpush1.msra.mxu0 0.0
        %635 = vmatprep.subr.mxu0 0.0
        %636 = vmatpush1.msra.mxu0 0.0
        %637 = vmatprep.subr.mxu0 0.0
        %638 = vmatpush1.msra.mxu0 0.0
        %639 = vmatprep.subr.mxu0 0.0
        %640 = vmatpush1.msra.mxu0 0.0
        %641 = vmatprep.subr.mxu0 0.0
        %642 = vmatpush1.msra.mxu0 0.0
        %643 = vmatprep.subr.mxu0 0.0
        %644 = vmatpush1.msra.mxu0 0.0
        %645 = vmatprep.subr.mxu0 0.0
        %646 = vmatpush1.msra.mxu0 0.0
        %647 = vmatprep.subr.mxu0 0.0
        %648 = vmatpush1.msra.mxu0 0.0
        %649 = vmatprep.mubr.f32.mxu0 0.0
        %v650 = vand.u32 %v271, 4294901760
        %v651 = vsub.f32 %v271, %v650
        %652 = vmatmul.mubr.f32.gmra.mrb[0].mxu0 %v651
        %v653 = vpop.f32.mrb[0].mxu0
        %v654 = vadd.f32 %v544, %v653
        %v655 = vpop.f32.mrb[0].mxu0
        %656 = vmatprep.mubr.f32.mxu0 0.0
        %v657 = vand.u32 %v272, 4294901760
        %v658 = vsub.f32 %v272, %v657
        %659 = vmatmul.mubr.f32.gmra.mrb[0].mxu0 %v658
        %v660 = vpop.f32.mrb[0].mxu0
        %v661 = vadd.f32 %v550, %v660
        %v662 = vpop.f32.mrb[0].mxu0
        %663 = vdwg.mxu0
        %664 = vmatprep.subr.mxu0 0.0
        %v665 = vand.u32 %v279, 4294901760
        %666 = vmatpush1.msra.mxu0 %v665
        %667 = vmatprep.subr.mxu0 0.0
        %v668 = vand.u32 %v280, 4294901760
        %669 = vmatpush1.msra.mxu0 %v668
        %670 = vmatprep.subr.mxu0 0.0
        %v671 = vand.u32 %v281, 4294901760
        %672 = vmatpush1.msra.mxu0 %v671
        %673 = vmatprep.subr.mxu0 0.0
        %v674 = vand.u32 %v282, 4294901760
        %675 = vmatpush1.msra.mxu0 %v674
        %676 = vmatprep.subr.mxu0 0.0
        %v677 = vand.u32 %v283, 4294901760
        %678 = vmatpush1.msra.mxu0 %v677
        %679 = vmatprep.subr.mxu0 0.0
        %v680 = vand.u32 %v284, 4294901760
        %681 = vmatpush1.msra.mxu0 %v680
        %682 = vmatprep.subr.mxu0 0.0
        %v683 = vand.u32 %v285, 4294901760
        %684 = vmatpush1.msra.mxu0 %v683
        %685 = vmatprep.subr.mxu0 0.0
        %v686 = vand.u32 %v286, 4294901760
        %687 = vmatpush1.msra.mxu0 %v686
        %688 = vmatprep.subr.mxu0 0.0
        %v689 = vand.u32 %v287, 4294901760
        %690 = vmatpush1.msra.mxu0 %v689
        %691 = vmatprep.subr.mxu0 0.0
        %v692 = vand.u32 %v288, 4294901760
        %693 = vmatpush1.msra.mxu0 %v692
        %694 = vmatprep.subr.mxu0 0.0
        %v695 = vand.u32 %v289, 4294901760
        %696 = vmatpush1.msra.mxu0 %v695
        %697 = vmatprep.subr.mxu0 0.0
        %v698 = vand.u32 %v290, 4294901760
        %699 = vmatpush1.msra.mxu0 %v698
        %700 = vmatprep.subr.mxu0 0.0
        %v701 = vand.u32 %v291, 4294901760
        %702 = vmatpush1.msra.mxu0 %v701
        %703 = vmatprep.subr.mxu0 0.0
        %v704 = vand.u32 %v292, 4294901760
        %705 = vmatpush1.msra.mxu0 %v704
        %706 = vmatprep.subr.mxu0 0.0
        %v707 = vand.u32 %v293, 4294901760
        %708 = vmatpush1.msra.mxu0 %v707
        %709 = vmatprep.subr.mxu0 0.0
        %v710 = vand.u32 %v294, 4294901760
        %711 = vmatpush1.msra.mxu0 %v710
        %712 = vmatprep.subr.mxu0 0.0
        %713 = vmatpush1.msra.mxu0 0.0
        %714 = vmatprep.subr.mxu0 0.0
        %715 = vmatpush1.msra.mxu0 0.0
        %716 = vmatprep.subr.mxu0 0.0
        %717 = vmatpush1.msra.mxu0 0.0
        %718 = vmatprep.subr.mxu0 0.0
        %719 = vmatpush1.msra.mxu0 0.0
        %720 = vmatprep.subr.mxu0 0.0
        %721 = vmatpush1.msra.mxu0 0.0
        %722 = vmatprep.subr.mxu0 0.0
        %723 = vmatpush1.msra.mxu0 0.0
        %724 = vmatprep.subr.mxu0 0.0
        %725 = vmatpush1.msra.mxu0 0.0
        %726 = vmatprep.subr.mxu0 0.0
        %727 = vmatpush1.msra.mxu0 0.0
        %728 = vmatprep.subr.mxu0 0.0
        %729 = vmatpush1.msra.mxu0 0.0
        %730 = vmatprep.subr.mxu0 0.0
        %731 = vmatpush1.msra.mxu0 0.0
        %732 = vmatprep.subr.mxu0 0.0
        %733 = vmatpush1.msra.mxu0 0.0
        %734 = vmatprep.subr.mxu0 0.0
        %735 = vmatpush1.msra.mxu0 0.0
        %736 = vmatprep.subr.mxu0 0.0
        %737 = vmatpush1.msra.mxu0 0.0
        %738 = vmatprep.subr.mxu0 0.0
        %739 = vmatpush1.msra.mxu0 0.0
        %740 = vmatprep.subr.mxu0 0.0
        %741 = vmatpush1.msra.mxu0 0.0
        %742 = vmatprep.subr.mxu0 0.0
        %743 = vmatpush1.msra.mxu0 0.0
        %744 = vmatprep.mubr.f32.mxu0 0.0
        %v745 = vand.u32 %v271, 4294901760
        %v746 = vsub.f32 %v271, %v745
        %v747 = vand.u32 %v746, 4294901760
        %748 = vmatmul.mubr.f32.gmra.mrb[0].mxu0 %v747
        %v749 = vpop.f32.mrb[0].mxu0
        %v750 = vadd.f32 %v654, %v749
        %v751 = vpop.f32.mrb[0].mxu0
        %752 = vmatprep.mubr.f32.mxu0 0.0
        %v753 = vand.u32 %v272, 4294901760
        %v754 = vsub.f32 %v272, %v753
        %v755 = vand.u32 %v754, 4294901760
        %756 = vmatmul.mubr.f32.gmra.mrb[0].mxu0 %v755
        %v757 = vpop.f32.mrb[0].mxu0
        %v758 = vadd.f32 %v661, %v757
        %v759 = vpop.f32.mrb[0].mxu0
        %760 = vdwg.mxu0
        %761 = vmatprep.subr.mxu0 0.0
        %v762 = vand.u32 %v279, 4294901760
        %v763 = vsub.f32 %v279, %v762
        %v764 = vand.u32 %v763, 4294901760
        %765 = vmatpush1.msra.mxu0 %v764
        %766 = vmatprep.subr.mxu0 0.0
        %v767 = vand.u32 %v280, 4294901760
        %v768 = vsub.f32 %v280, %v767
        %v769 = vand.u32 %v768, 4294901760
        %770 = vmatpush1.msra.mxu0 %v769
        %771 = vmatprep.subr.mxu0 0.0
        %v772 = vand.u32 %v281, 4294901760
        %v773 = vsub.f32 %v281, %v772
        %v774 = vand.u32 %v773, 4294901760
        %775 = vmatpush1.msra.mxu0 %v774
        %776 = vmatprep.subr.mxu0 0.0
        %v777 = vand.u32 %v282, 4294901760
        %v778 = vsub.f32 %v282, %v777
        %v779 = vand.u32 %v778, 4294901760
        %780 = vmatpush1.msra.mxu0 %v779
        %781 = vmatprep.subr.mxu0 0.0
        %v782 = vand.u32 %v283, 4294901760
        %v783 = vsub.f32 %v283, %v782
        %v784 = vand.u32 %v783, 4294901760
        %785 = vmatpush1.msra.mxu0 %v784
        %786 = vmatprep.subr.mxu0 0.0
        %v787 = vand.u32 %v284, 4294901760
        %v788 = vsub.f32 %v284, %v787
        %v789 = vand.u32 %v788, 4294901760
        %790 = vmatpush1.msra.mxu0 %v789
        %791 = vmatprep.subr.mxu0 0.0
        %v792 = vand.u32 %v285, 4294901760
        %v793 = vsub.f32 %v285, %v792
        %v794 = vand.u32 %v793, 4294901760
        %795 = vmatpush1.msra.mxu0 %v794
        %796 = vmatprep.subr.mxu0 0.0
        %v797 = vand.u32 %v286, 4294901760
        %v798 = vsub.f32 %v286, %v797
        %v799 = vand.u32 %v798, 4294901760
        %800 = vmatpush1.msra.mxu0 %v799
        %801 = vmatprep.subr.mxu0 0.0
        %v802 = vand.u32 %v287, 4294901760
        %v803 = vsub.f32 %v287, %v802
        %v804 = vand.u32 %v803, 4294901760
        %805 = vmatpush1.msra.mxu0 %v804
        %806 = vmatprep.subr.mxu0 0.0
        %v807 = vand.u32 %v288, 4294901760
        %v808 = vsub.f32 %v288, %v807
        %v809 = vand.u32 %v808, 4294901760
        %810 = vmatpush1.msra.mxu0 %v809
        %811 = vmatprep.subr.mxu0 0.0
        %v812 = vand.u32 %v289, 4294901760
        %v813 = vsub.f32 %v289, %v812
        %v814 = vand.u32 %v813, 4294901760
        %815 = vmatpush1.msra.mxu0 %v814
        %816 = vmatprep.subr.mxu0 0.0
        %v817 = vand.u32 %v290, 4294901760
        %v818 = vsub.f32 %v290, %v817
        %v819 = vand.u32 %v818, 4294901760
        %820 = vmatpush1.msra.mxu0 %v819
        %821 = vmatprep.subr.mxu0 0.0
        %v822 = vand.u32 %v291, 4294901760
        %v823 = vsub.f32 %v291, %v822
        %v824 = vand.u32 %v823, 4294901760
        %825 = vmatpush1.msra.mxu0 %v824
        %826 = vmatprep.subr.mxu0 0.0
        %v827 = vand.u32 %v292, 4294901760
        %v828 = vsub.f32 %v292, %v827
        %v829 = vand.u32 %v828, 4294901760
        %830 = vmatpush1.msra.mxu0 %v829
        %831 = vmatprep.subr.mxu0 0.0
        %v832 = vand.u32 %v293, 4294901760
        %v833 = vsub.f32 %v293, %v832
        %v834 = vand.u32 %v833, 4294901760
        %835 = vmatpush1.msra.mxu0 %v834
        %836 = vmatprep.subr.mxu0 0.0
        %v837 = vand.u32 %v294, 4294901760
        %v838 = vsub.f32 %v294, %v837
        %v839 = vand.u32 %v838, 4294901760
        %840 = vmatpush1.msra.mxu0 %v839
        %841 = vmatprep.subr.mxu0 0.0
        %842 = vmatpush1.msra.mxu0 0.0
        %843 = vmatprep.subr.mxu0 0.0
        %844 = vmatpush1.msra.mxu0 0.0
        %845 = vmatprep.subr.mxu0 0.0
        %846 = vmatpush1.msra.mxu0 0.0
        %847 = vmatprep.subr.mxu0 0.0
        %848 = vmatpush1.msra.mxu0 0.0
        %849 = vmatprep.subr.mxu0 0.0
        %850 = vmatpush1.msra.mxu0 0.0
        %851 = vmatprep.subr.mxu0 0.0
        %852 = vmatpush1.msra.mxu0 0.0
        %853 = vmatprep.subr.mxu0 0.0
        %854 = vmatpush1.msra.mxu0 0.0
        %855 = vmatprep.subr.mxu0 0.0
        %856 = vmatpush1.msra.mxu0 0.0
        %857 = vmatprep.subr.mxu0 0.0
        %858 = vmatpush1.msra.mxu0 0.0
        %859 = vmatprep.subr.mxu0 0.0
        %860 = vmatpush1.msra.mxu0 0.0
        %861 = vmatprep.subr.mxu0 0.0
        %862 = vmatpush1.msra.mxu0 0.0
        %863 = vmatprep.subr.mxu0 0.0
        %864 = vmatpush1.msra.mxu0 0.0
        %865 = vmatprep.subr.mxu0 0.0
        %866 = vmatpush1.msra.mxu0 0.0
        %867 = vmatprep.subr.mxu0 0.0
        %868 = vmatpush1.msra.mxu0 0.0
        %869 = vmatprep.subr.mxu0 0.0
        %870 = vmatpush1.msra.mxu0 0.0
        %871 = vmatprep.subr.mxu0 0.0
        %872 = vmatpush1.msra.mxu0 0.0
        %873 = vmatprep.mubr.f32.mxu0 0.0
        %v874 = vand.u32 %v271, 4294901760
        %875 = vmatmul.mubr.f32.gmra.mrb[0].mxu0 %v874
        %v876 = vpop.f32.mrb[0].mxu0
        %v877 = vadd.f32 %v750, %v876
        %v878 = vpop.f32.mrb[0].mxu0
        %879 = vmatprep.mubr.f32.mxu0 0.0
        %v880 = vand.u32 %v272, 4294901760
        %881 = vmatmul.mubr.f32.gmra.mrb[0].mxu0 %v880
        %v882 = vpop.f32.mrb[0].mxu0
        %v883 = vadd.f32 %v758, %v882
        %v884 = vpop.f32.mrb[0].mxu0
        %885 = vdwg.mxu0
        %886 = vmatprep.subr.mxu0 0.0
        %v887 = vand.u32 %v279, 4294901760
        %888 = vmatpush1.msra.mxu0 %v887
        %889 = vmatprep.subr.mxu0 0.0
        %v890 = vand.u32 %v280, 4294901760
        %891 = vmatpush1.msra.mxu0 %v890
        %892 = vmatprep.subr.mxu0 0.0
        %v893 = vand.u32 %v281, 4294901760
        %894 = vmatpush1.msra.mxu0 %v893
        %895 = vmatprep.subr.mxu0 0.0
        %v896 = vand.u32 %v282, 4294901760
        %897 = vmatpush1.msra.mxu0 %v896
        %898 = vmatprep.subr.mxu0 0.0
        %v899 = vand.u32 %v283, 4294901760
        %900 = vmatpush1.msra.mxu0 %v899
        %901 = vmatprep.subr.mxu0 0.0
        %v902 = vand.u32 %v284, 4294901760
        %903 = vmatpush1.msra.mxu0 %v902
        %904 = vmatprep.subr.mxu0 0.0
        %v905 = vand.u32 %v285, 4294901760
        %906 = vmatpush1.msra.mxu0 %v905
        %907 = vmatprep.subr.mxu0 0.0
        %v908 = vand.u32 %v286, 4294901760
        %909 = vmatpush1.msra.mxu0 %v908
        %910 = vmatprep.subr.mxu0 0.0
        %v911 = vand.u32 %v287, 4294901760
        %912 = vmatpush1.msra.mxu0 %v911
        %913 = vmatprep.subr.mxu0 0.0
        %v914 = vand.u32 %v288, 4294901760
        %915 = vmatpush1.msra.mxu0 %v914
        %916 = vmatprep.subr.mxu0 0.0
        %v917 = vand.u32 %v289, 4294901760
        %918 = vmatpush1.msra.mxu0 %v917
        %919 = vmatprep.subr.mxu0 0.0
        %v920 = vand.u32 %v290, 4294901760
        %921 = vmatpush1.msra.mxu0 %v920
        %922 = vmatprep.subr.mxu0 0.0
        %v923 = vand.u32 %v291, 4294901760
        %924 = vmatpush1.msra.mxu0 %v923
        %925 = vmatprep.subr.mxu0 0.0
        %v926 = vand.u32 %v292, 4294901760
        %927 = vmatpush1.msra.mxu0 %v926
        %928 = vmatprep.subr.mxu0 0.0
        %v929 = vand.u32 %v293, 4294901760
        %930 = vmatpush1.msra.mxu0 %v929
        %931 = vmatprep.subr.mxu0 0.0
        %v932 = vand.u32 %v294, 4294901760
        %933 = vmatpush1.msra.mxu0 %v932
        %934 = vmatprep.subr.mxu0 0.0
        %935 = vmatpush1.msra.mxu0 0.0
        %936 = vmatprep.subr.mxu0 0.0
        %937 = vmatpush1.msra.mxu0 0.0
        %938 = vmatprep.subr.mxu0 0.0
        %939 = vmatpush1.msra.mxu0 0.0
        %940 = vmatprep.subr.mxu0 0.0
        %941 = vmatpush1.msra.mxu0 0.0
        %942 = vmatprep.subr.mxu0 0.0
        %943 = vmatpush1.msra.mxu0 0.0
        %944 = vmatprep.subr.mxu0 0.0
        %945 = vmatpush1.msra.mxu0 0.0
        %946 = vmatprep.subr.mxu0 0.0
        %947 = vmatpush1.msra.mxu0 0.0
        %948 = vmatprep.subr.mxu0 0.0
        %949 = vmatpush1.msra.mxu0 0.0
        %950 = vmatprep.subr.mxu0 0.0
        %951 = vmatpush1.msra.mxu0 0.0
        %952 = vmatprep.subr.mxu0 0.0
        %953 = vmatpush1.msra.mxu0 0.0
        %954 = vmatprep.subr.mxu0 0.0
        %955 = vmatpush1.msra.mxu0 0.0
        %956 = vmatprep.subr.mxu0 0.0
        %957 = vmatpush1.msra.mxu0 0.0
        %958 = vmatprep.subr.mxu0 0.0
        %959 = vmatpush1.msra.mxu0 0.0
        %960 = vmatprep.subr.mxu0 0.0
        %961 = vmatpush1.msra.mxu0 0.0
        %962 = vmatprep.subr.mxu0 0.0
        %963 = vmatpush1.msra.mxu0 0.0
        %964 = vmatprep.subr.mxu0 0.0
        %965 = vmatpush1.msra.mxu0 0.0
        %966 = vmatprep.mubr.f32.mxu0 0.0
        %v967 = vand.u32 %v271, 4294901760
        %968 = vmatmul.mubr.f32.gmra.mrb[0].mxu0 %v967
        %v969 = vpop.f32.mrb[0].mxu0
        %v970 = vadd.f32 %v877, %v969
        %v971 = vpop.f32.mrb[0].mxu0
        %972 = vmatprep.mubr.f32.mxu0 0.0
        %v973 = vand.u32 %v272, 4294901760
        %974 = vmatmul.mubr.f32.gmra.mrb[0].mxu0 %v973
        %v975 = vpop.f32.mrb[0].mxu0
        %v976 = vadd.f32 %v883, %v975
        %v977 = vpop.f32.mrb[0].mxu0
        %978 = vdwg.mxu0
        %979 = vmatprep.subr.mxu0 0.0
        %v980 = vand.u32 %v279, 4294901760
        %981 = vmatpush1.msra.mxu0 %v980
        %982 = vmatprep.subr.mxu0 0.0
        %v983 = vand.u32 %v280, 4294901760
        %984 = vmatpush1.msra.mxu0 %v983
        %985 = vmatprep.subr.mxu0 0.0
        %v986 = vand.u32 %v281, 4294901760
        %987 = vmatpush1.msra.mxu0 %v986
        %988 = vmatprep.subr.mxu0 0.0
        %v989 = vand.u32 %v282, 4294901760
        %990 = vmatpush1.msra.mxu0 %v989
        %991 = vmatprep.subr.mxu0 0.0
        %v992 = vand.u32 %v283, 4294901760
        %993 = vmatpush1.msra.mxu0 %v992
        %994 = vmatprep.subr.mxu0 0.0
        %v995 = vand.u32 %v284, 4294901760
        %996 = vmatpush1.msra.mxu0 %v995
        %997 = vmatprep.subr.mxu0 0.0
        %v998 = vand.u32 %v285, 4294901760
        %999 = vmatpush1.msra.mxu0 %v998
        %1000 = vmatprep.subr.mxu0 0.0
        %v1001 = vand.u32 %v286, 4294901760
        %1002 = vmatpush1.msra.mxu0 %v1001
        %1003 = vmatprep.subr.mxu0 0.0
        %v1004 = vand.u32 %v287, 4294901760
        %1005 = vmatpush1.msra.mxu0 %v1004
        %1006 = vmatprep.subr.mxu0 0.0
        %v1007 = vand.u32 %v288, 4294901760
        %1008 = vmatpush1.msra.mxu0 %v1007
        %1009 = vmatprep.subr.mxu0 0.0
        %v1010 = vand.u32 %v289, 4294901760
        %1011 = vmatpush1.msra.mxu0 %v1010
        %1012 = vmatprep.subr.mxu0 0.0
        %v1013 = vand.u32 %v290, 4294901760
        %1014 = vmatpush1.msra.mxu0 %v1013
        %1015 = vmatprep.subr.mxu0 0.0
        %v1016 = vand.u32 %v291, 4294901760
        %1017 = vmatpush1.msra.mxu0 %v1016
        %1018 = vmatprep.subr.mxu0 0.0
        %v1019 = vand.u32 %v292, 4294901760
        %1020 = vmatpush1.msra.mxu0 %v1019
        %1021 = vmatprep.subr.mxu0 0.0
        %v1022 = vand.u32 %v293, 4294901760
        %1023 = vmatpush1.msra.mxu0 %v1022
        %1024 = vmatprep.subr.mxu0 0.0
        %v1025 = vand.u32 %v294, 4294901760
        %1026 = vmatpush1.msra.mxu0 %v1025
        %1027 = vmatprep.subr.mxu0 0.0
        %1028 = vmatpush1.msra.mxu0 0.0
        %1029 = vmatprep.subr.mxu0 0.0
        %1030 = vmatpush1.msra.mxu0 0.0
        %1031 = vmatprep.subr.mxu0 0.0
        %1032 = vmatpush1.msra.mxu0 0.0
        %1033 = vmatprep.subr.mxu0 0.0
        %1034 = vmatpush1.msra.mxu0 0.0
        %1035 = vmatprep.subr.mxu0 0.0
        %1036 = vmatpush1.msra.mxu0 0.0
        %1037 = vmatprep.subr.mxu0 0.0
        %1038 = vmatpush1.msra.mxu0 0.0
        %1039 = vmatprep.subr.mxu0 0.0
        %1040 = vmatpush1.msra.mxu0 0.0
        %1041 = vmatprep.subr.mxu0 0.0
        %1042 = vmatpush1.msra.mxu0 0.0
        %1043 = vmatprep.subr.mxu0 0.0
        %1044 = vmatpush1.msra.mxu0 0.0
        %1045 = vmatprep.subr.mxu0 0.0
        %1046 = vmatpush1.msra.mxu0 0.0
        %1047 = vmatprep.subr.mxu0 0.0
        %1048 = vmatpush1.msra.mxu0 0.0
        %1049 = vmatprep.subr.mxu0 0.0
        %1050 = vmatpush1.msra.mxu0 0.0
        %1051 = vmatprep.subr.mxu0 0.0
        %1052 = vmatpush1.msra.mxu0 0.0
        %1053 = vmatprep.subr.mxu0 0.0
        %1054 = vmatpush1.msra.mxu0 0.0
        %1055 = vmatprep.subr.mxu0 0.0
        %1056 = vmatpush1.msra.mxu0 0.0
        %1057 = vmatprep.subr.mxu0 0.0
        %1058 = vmatpush1.msra.mxu0 0.0
        %1059 = vmatprep.mubr.f32.mxu0 0.0
        %v1060 = vand.u32 %v277, 4294901760
        %v1061 = vsub.f32 %v277, %v1060
        %v1062 = vand.u32 %v1061, 4294901760
        %v1063 = vsub.f32 %v1061, %v1062
        %v1064 = vand.u32 %v1063, 4294901760
        %1065 = vmatmul.mubr.f32.gmra.mrb[0].mxu0 %v1064
        %v1066 = vpop.f32.mrb[0].mxu0
        %v1067 = vadd.f32 0.0, %v1066
        %v1068 = vpop.f32.mrb[0].mxu0
        %1069 = vmatprep.mubr.f32.mxu0 0.0
        %v1070 = vand.u32 %v278, 4294901760
        %v1071 = vsub.f32 %v278, %v1070
        %v1072 = vand.u32 %v1071, 4294901760
        %v1073 = vsub.f32 %v1071, %v1072
        %v1074 = vand.u32 %v1073, 4294901760
        %1075 = vmatmul.mubr.f32.gmra.mrb[0].mxu0 %v1074
        %v1076 = vpop.f32.mrb[0].mxu0
        %v1077 = vadd.f32 0.0, %v1076
        %v1078 = vpop.f32.mrb[0].mxu0
        %1079 = vdwg.mxu0
        %1080 = vmatprep.subr.mxu0 0.0
        %v1081 = vand.u32 %v279, 4294901760
        %v1082 = vsub.f32 %v279, %v1081
        %v1083 = vand.u32 %v1082, 4294901760
        %v1084 = vsub.f32 %v1082, %v1083
        %v1085 = vand.u32 %v1084, 4294901760
        %1086 = vmatpush1.msra.mxu0 %v1085
        %1087 = vmatprep.subr.mxu0 0.0
        %v1088 = vand.u32 %v280, 4294901760
        %v1089 = vsub.f32 %v280, %v1088
        %v1090 = vand.u32 %v1089, 4294901760
        %v1091 = vsub.f32 %v1089, %v1090
        %v1092 = vand.u32 %v1091, 4294901760
        %1093 = vmatpush1.msra.mxu0 %v1092
        %1094 = vmatprep.subr.mxu0 0.0
        %v1095 = vand.u32 %v281, 4294901760
        %v1096 = vsub.f32 %v281, %v1095
        %v1097 = vand.u32 %v1096, 4294901760
        %v1098 = vsub.f32 %v1096, %v1097
        %v1099 = vand.u32 %v1098, 4294901760
        %1100 = vmatpush1.msra.mxu0 %v1099
        %1101 = vmatprep.subr.mxu0 0.0
        %v1102 = vand.u32 %v282, 4294901760
        %v1103 = vsub.f32 %v282, %v1102
        %v1104 = vand.u32 %v1103, 4294901760
        %v1105 = vsub.f32 %v1103, %v1104
        %v1106 = vand.u32 %v1105, 4294901760
        %1107 = vmatpush1.msra.mxu0 %v1106
        %1108 = vmatprep.subr.mxu0 0.0
        %v1109 = vand.u32 %v283, 4294901760
        %v1110 = vsub.f32 %v283, %v1109
        %v1111 = vand.u32 %v1110, 4294901760
        %v1112 = vsub.f32 %v1110, %v1111
        %v1113 = vand.u32 %v1112, 4294901760
        %1114 = vmatpush1.msra.mxu0 %v1113
        %1115 = vmatprep.subr.mxu0 0.0
        %v1116 = vand.u32 %v284, 4294901760
        %v1117 = vsub.f32 %v284, %v1116
        %v1118 = vand.u32 %v1117, 4294901760
        %v1119 = vsub.f32 %v1117, %v1118
        %v1120 = vand.u32 %v1119, 4294901760
        %1121 = vmatpush1.msra.mxu0 %v1120
        %1122 = vmatprep.subr.mxu0 0.0
        %v1123 = vand.u32 %v285, 4294901760
        %v1124 = vsub.f32 %v285, %v1123
        %v1125 = vand.u32 %v1124, 4294901760
        %v1126 = vsub.f32 %v1124, %v1125
        %v1127 = vand.u32 %v1126, 4294901760
        %1128 = vmatpush1.msra.mxu0 %v1127
        %1129 = vmatprep.subr.mxu0 0.0
        %v1130 = vand.u32 %v286, 4294901760
        %v1131 = vsub.f32 %v286, %v1130
        %v1132 = vand.u32 %v1131, 4294901760
        %v1133 = vsub.f32 %v1131, %v1132
        %v1134 = vand.u32 %v1133, 4294901760
        %1135 = vmatpush1.msra.mxu0 %v1134
        %1136 = vmatprep.subr.mxu0 0.0
        %v1137 = vand.u32 %v287, 4294901760
        %v1138 = vsub.f32 %v287, %v1137
        %v1139 = vand.u32 %v1138, 4294901760
        %v1140 = vsub.f32 %v1138, %v1139
        %v1141 = vand.u32 %v1140, 4294901760
        %1142 = vmatpush1.msra.mxu0 %v1141
        %1143 = vmatprep.subr.mxu0 0.0
        %v1144 = vand.u32 %v288, 4294901760
        %v1145 = vsub.f32 %v288, %v1144
        %v1146 = vand.u32 %v1145, 4294901760
        %v1147 = vsub.f32 %v1145, %v1146
        %v1148 = vand.u32 %v1147, 4294901760
        %1149 = vmatpush1.msra.mxu0 %v1148
        %1150 = vmatprep.subr.mxu0 0.0
        %v1151 = vand.u32 %v289, 4294901760
        %v1152 = vsub.f32 %v289, %v1151
        %v1153 = vand.u32 %v1152, 4294901760
        %v1154 = vsub.f32 %v1152, %v1153
        %v1155 = vand.u32 %v1154, 4294901760
        %1156 = vmatpush1.msra.mxu0 %v1155
        %1157 = vmatprep.subr.mxu0 0.0
        %v1158 = vand.u32 %v290, 4294901760
        %v1159 = vsub.f32 %v290, %v1158
        %v1160 = vand.u32 %v1159, 4294901760
        %v1161 = vsub.f32 %v1159, %v1160
        %v1162 = vand.u32 %v1161, 4294901760
        %1163 = vmatpush1.msra.mxu0 %v1162
        %1164 = vmatprep.subr.mxu0 0.0
        %v1165 = vand.u32 %v291, 4294901760
        %v1166 = vsub.f32 %v291, %v1165
        %v1167 = vand.u32 %v1166, 4294901760
        %v1168 = vsub.f32 %v1166, %v1167
        %v1169 = vand.u32 %v1168, 4294901760
        %1170 = vmatpush1.msra.mxu0 %v1169
        %1171 = vmatprep.subr.mxu0 0.0
        %v1172 = vand.u32 %v292, 4294901760
        %v1173 = vsub.f32 %v292, %v1172
        %v1174 = vand.u32 %v1173, 4294901760
        %v1175 = vsub.f32 %v1173, %v1174
        %v1176 = vand.u32 %v1175, 4294901760
        %1177 = vmatpush1.msra.mxu0 %v1176
        %1178 = vmatprep.subr.mxu0 0.0
        %v1179 = vand.u32 %v293, 4294901760
        %v1180 = vsub.f32 %v293, %v1179
        %v1181 = vand.u32 %v1180, 4294901760
        %v1182 = vsub.f32 %v1180, %v1181
        %v1183 = vand.u32 %v1182, 4294901760
        %1184 = vmatpush1.msra.mxu0 %v1183
        %1185 = vmatprep.subr.mxu0 0.0
        %v1186 = vand.u32 %v294, 4294901760
        %v1187 = vsub.f32 %v294, %v1186
        %v1188 = vand.u32 %v1187, 4294901760
        %v1189 = vsub.f32 %v1187, %v1188
        %v1190 = vand.u32 %v1189, 4294901760
        %1191 = vmatpush1.msra.mxu0 %v1190
        %1192 = vmatprep.subr.mxu0 0.0
        %1193 = vmatpush1.msra.mxu0 0.0
        %1194 = vmatprep.subr.mxu0 0.0
        %1195 = vmatpush1.msra.mxu0 0.0
        %1196 = vmatprep.subr.mxu0 0.0
        %1197 = vmatpush1.msra.mxu0 0.0
        %1198 = vmatprep.subr.mxu0 0.0
        %1199 = vmatpush1.msra.mxu0 0.0
        %1200 = vmatprep.subr.mxu0 0.0
        %1201 = vmatpush1.msra.mxu0 0.0
        %1202 = vmatprep.subr.mxu0 0.0
        %1203 = vmatpush1.msra.mxu0 0.0
        %1204 = vmatprep.subr.mxu0 0.0
        %1205 = vmatpush1.msra.mxu0 0.0
        %1206 = vmatprep.subr.mxu0 0.0
        %1207 = vmatpush1.msra.mxu0 0.0
        %1208 = vmatprep.subr.mxu0 0.0
        %1209 = vmatpush1.msra.mxu0 0.0
        %1210 = vmatprep.subr.mxu0 0.0
        %1211 = vmatpush1.msra.mxu0 0.0
        %1212 = vmatprep.subr.mxu0 0.0
        %1213 = vmatpush1.msra.mxu0 0.0
        %1214 = vmatprep.subr.mxu0 0.0
        %1215 = vmatpush1.msra.mxu0 0.0
        %1216 = vmatprep.subr.mxu0 0.0
        %1217 = vmatpush1.msra.mxu0 0.0
        %1218 = vmatprep.subr.mxu0 0.0
        %1219 = vmatpush1.msra.mxu0 0.0
        %1220 = vmatprep.subr.mxu0 0.0
        %1221 = vmatpush1.msra.mxu0 0.0
        %1222 = vmatprep.subr.mxu0 0.0
        %1223 = vmatpush1.msra.mxu0 0.0
        %1224 = vmatprep.mubr.f32.mxu0 0.0
        %v1225 = vand.u32 %v277, 4294901760
        %1226 = vmatmul.mubr.f32.gmra.mrb[0].mxu0 %v1225
        %v1227 = vpop.f32.mrb[0].mxu0
        %v1228 = vadd.f32 %v1067, %v1227
        %v1229 = vpop.f32.mrb[0].mxu0
        %1230 = vmatprep.mubr.f32.mxu0 0.0
        %v1231 = vand.u32 %v278, 4294901760
        %1232 = vmatmul.mubr.f32.gmra.mrb[0].mxu0 %v1231
        %v1233 = vpop.f32.mrb[0].mxu0
        %v1234 = vadd.f32 %v1077, %v1233
        %v1235 = vpop.f32.mrb[0].mxu0
        %1236 = vdwg.mxu0
        %1237 = vmatprep.subr.mxu0 0.0
        %v1238 = vand.u32 %v279, 4294901760
        %v1239 = vsub.f32 %v279, %v1238
        %1240 = vmatpush1.msra.mxu0 %v1239
        %1241 = vmatprep.subr.mxu0 0.0
        %v1242 = vand.u32 %v280, 4294901760
        %v1243 = vsub.f32 %v280, %v1242
        %1244 = vmatpush1.msra.mxu0 %v1243
        %1245 = vmatprep.subr.mxu0 0.0
        %v1246 = vand.u32 %v281, 4294901760
        %v1247 = vsub.f32 %v281, %v1246
        %1248 = vmatpush1.msra.mxu0 %v1247
        %1249 = vmatprep.subr.mxu0 0.0
        %v1250 = vand.u32 %v282, 4294901760
        %v1251 = vsub.f32 %v282, %v1250
        %1252 = vmatpush1.msra.mxu0 %v1251
        %1253 = vmatprep.subr.mxu0 0.0
        %v1254 = vand.u32 %v283, 4294901760
        %v1255 = vsub.f32 %v283, %v1254
        %1256 = vmatpush1.msra.mxu0 %v1255
        %1257 = vmatprep.subr.mxu0 0.0
        %v1258 = vand.u32 %v284, 4294901760
        %v1259 = vsub.f32 %v284, %v1258
        %1260 = vmatpush1.msra.mxu0 %v1259
        %1261 = vmatprep.subr.mxu0 0.0
        %v1262 = vand.u32 %v285, 4294901760
        %v1263 = vsub.f32 %v285, %v1262
        %1264 = vmatpush1.msra.mxu0 %v1263
        %1265 = vmatprep.subr.mxu0 0.0
        %v1266 = vand.u32 %v286, 4294901760
        %v1267 = vsub.f32 %v286, %v1266
        %1268 = vmatpush1.msra.mxu0 %v1267
        %1269 = vmatprep.subr.mxu0 0.0
        %v1270 = vand.u32 %v287, 4294901760
        %v1271 = vsub.f32 %v287, %v1270
        %1272 = vmatpush1.msra.mxu0 %v1271
        %1273 = vmatprep.subr.mxu0 0.0
        %v1274 = vand.u32 %v288, 4294901760
        %v1275 = vsub.f32 %v288, %v1274
        %1276 = vmatpush1.msra.mxu0 %v1275
        %1277 = vmatprep.subr.mxu0 0.0
        %v1278 = vand.u32 %v289, 4294901760
        %v1279 = vsub.f32 %v289, %v1278
        %1280 = vmatpush1.msra.mxu0 %v1279
        %1281 = vmatprep.subr.mxu0 0.0
        %v1282 = vand.u32 %v290, 4294901760
        %v1283 = vsub.f32 %v290, %v1282
        %1284 = vmatpush1.msra.mxu0 %v1283
        %1285 = vmatprep.subr.mxu0 0.0
        %v1286 = vand.u32 %v291, 4294901760
        %v1287 = vsub.f32 %v291, %v1286
        %1288 = vmatpush1.msra.mxu0 %v1287
        %1289 = vmatprep.subr.mxu0 0.0
        %v1290 = vand.u32 %v292, 4294901760
        %v1291 = vsub.f32 %v292, %v1290
        %1292 = vmatpush1.msra.mxu0 %v1291
        %1293 = vmatprep.subr.mxu0 0.0
        %v1294 = vand.u32 %v293, 4294901760
        %v1295 = vsub.f32 %v293, %v1294
        %1296 = vmatpush1.msra.mxu0 %v1295
        %1297 = vmatprep.subr.mxu0 0.0
        %v1298 = vand.u32 %v294, 4294901760
        %v1299 = vsub.f32 %v294, %v1298
        %1300 = vmatpush1.msra.mxu0 %v1299
        %1301 = vmatprep.subr.mxu0 0.0
        %1302 = vmatpush1.msra.mxu0 0.0
        %1303 = vmatprep.subr.mxu0 0.0
        %1304 = vmatpush1.msra.mxu0 0.0
        %1305 = vmatprep.subr.mxu0 0.0
        %1306 = vmatpush1.msra.mxu0 0.0
        %1307 = vmatprep.subr.mxu0 0.0
        %1308 = vmatpush1.msra.mxu0 0.0
        %1309 = vmatprep.subr.mxu0 0.0
        %1310 = vmatpush1.msra.mxu0 0.0
        %1311 = vmatprep.subr.mxu0 0.0
        %1312 = vmatpush1.msra.mxu0 0.0
        %1313 = vmatprep.subr.mxu0 0.0
        %1314 = vmatpush1.msra.mxu0 0.0
        %1315 = vmatprep.subr.mxu0 0.0
        %1316 = vmatpush1.msra.mxu0 0.0
        %1317 = vmatprep.subr.mxu0 0.0
        %1318 = vmatpush1.msra.mxu0 0.0
        %1319 = vmatprep.subr.mxu0 0.0
        %1320 = vmatpush1.msra.mxu0 0.0
        %1321 = vmatprep.subr.mxu0 0.0
        %1322 = vmatpush1.msra.mxu0 0.0
        %1323 = vmatprep.subr.mxu0 0.0
        %1324 = vmatpush1.msra.mxu0 0.0
        %1325 = vmatprep.subr.mxu0 0.0
        %1326 = vmatpush1.msra.mxu0 0.0
        %1327 = vmatprep.subr.mxu0 0.0
        %1328 = vmatpush1.msra.mxu0 0.0
        %1329 = vmatprep.subr.mxu0 0.0
        %1330 = vmatpush1.msra.mxu0 0.0
        %1331 = vmatprep.subr.mxu0 0.0
        %1332 = vmatpush1.msra.mxu0 0.0
        %1333 = vmatprep.mubr.f32.mxu0 0.0
        %v1334 = vand.u32 %v277, 4294901760
        %v1335 = vsub.f32 %v277, %v1334
        %1336 = vmatmul.mubr.f32.gmra.mrb[0].mxu0 %v1335
        %v1337 = vpop.f32.mrb[0].mxu0
        %v1338 = vadd.f32 %v1228, %v1337
        %v1339 = vpop.f32.mrb[0].mxu0
        %1340 = vmatprep.mubr.f32.mxu0 0.0
        %v1341 = vand.u32 %v278, 4294901760
        %v1342 = vsub.f32 %v278, %v1341
        %1343 = vmatmul.mubr.f32.gmra.mrb[0].mxu0 %v1342
        %v1344 = vpop.f32.mrb[0].mxu0
        %v1345 = vadd.f32 %v1234, %v1344
        %v1346 = vpop.f32.mrb[0].mxu0
        %1347 = vdwg.mxu0
        %1348 = vmatprep.subr.mxu0 0.0
        %v1349 = vand.u32 %v279, 4294901760
        %1350 = vmatpush1.msra.mxu0 %v1349
        %1351 = vmatprep.subr.mxu0 0.0
        %v1352 = vand.u32 %v280, 4294901760
        %1353 = vmatpush1.msra.mxu0 %v1352
        %1354 = vmatprep.subr.mxu0 0.0
        %v1355 = vand.u32 %v281, 4294901760
        %1356 = vmatpush1.msra.mxu0 %v1355
        %1357 = vmatprep.subr.mxu0 0.0
        %v1358 = vand.u32 %v282, 4294901760
        %1359 = vmatpush1.msra.mxu0 %v1358
        %1360 = vmatprep.subr.mxu0 0.0
        %v1361 = vand.u32 %v283, 4294901760
        %1362 = vmatpush1.msra.mxu0 %v1361
        %1363 = vmatprep.subr.mxu0 0.0
        %v1364 = vand.u32 %v284, 4294901760
        %1365 = vmatpush1.msra.mxu0 %v1364
        %1366 = vmatprep.subr.mxu0 0.0
        %v1367 = vand.u32 %v285, 4294901760
        %1368 = vmatpush1.msra.mxu0 %v1367
        %1369 = vmatprep.subr.mxu0 0.0
        %v1370 = vand.u32 %v286, 4294901760
        %1371 = vmatpush1.msra.mxu0 %v1370
        %1372 = vmatprep.subr.mxu0 0.0
        %v1373 = vand.u32 %v287, 4294901760
        %1374 = vmatpush1.msra.mxu0 %v1373
        %1375 = vmatprep.subr.mxu0 0.0
        %v1376 = vand.u32 %v288, 4294901760
        %1377 = vmatpush1.msra.mxu0 %v1376
        %1378 = vmatprep.subr.mxu0 0.0
        %v1379 = vand.u32 %v289, 4294901760
        %1380 = vmatpush1.msra.mxu0 %v1379
        %1381 = vmatprep.subr.mxu0 0.0
        %v1382 = vand.u32 %v290, 4294901760
        %1383 = vmatpush1.msra.mxu0 %v1382
        %1384 = vmatprep.subr.mxu0 0.0
        %v1385 = vand.u32 %v291, 4294901760
        %1386 = vmatpush1.msra.mxu0 %v1385
        %1387 = vmatprep.subr.mxu0 0.0
        %v1388 = vand.u32 %v292, 4294901760
        %1389 = vmatpush1.msra.mxu0 %v1388
        %1390 = vmatprep.subr.mxu0 0.0
        %v1391 = vand.u32 %v293, 4294901760
        %1392 = vmatpush1.msra.mxu0 %v1391
        %1393 = vmatprep.subr.mxu0 0.0
        %v1394 = vand.u32 %v294, 4294901760
        %1395 = vmatpush1.msra.mxu0 %v1394
        %1396 = vmatprep.subr.mxu0 0.0
        %1397 = vmatpush1.msra.mxu0 0.0
        %1398 = vmatprep.subr.mxu0 0.0
        %1399 = vmatpush1.msra.mxu0 0.0
        %1400 = vmatprep.subr.mxu0 0.0
        %1401 = vmatpush1.msra.mxu0 0.0
        %1402 = vmatprep.subr.mxu0 0.0
        %1403 = vmatpush1.msra.mxu0 0.0
        %1404 = vmatprep.subr.mxu0 0.0
        %1405 = vmatpush1.msra.mxu0 0.0
        %1406 = vmatprep.subr.mxu0 0.0
        %1407 = vmatpush1.msra.mxu0 0.0
        %1408 = vmatprep.subr.mxu0 0.0
        %1409 = vmatpush1.msra.mxu0 0.0
        %1410 = vmatprep.subr.mxu0 0.0
        %1411 = vmatpush1.msra.mxu0 0.0
        %1412 = vmatprep.subr.mxu0 0.0
        %1413 = vmatpush1.msra.mxu0 0.0
        %1414 = vmatprep.subr.mxu0 0.0
        %1415 = vmatpush1.msra.mxu0 0.0
        %1416 = vmatprep.subr.mxu0 0.0
        %1417 = vmatpush1.msra.mxu0 0.0
        %1418 = vmatprep.subr.mxu0 0.0
        %1419 = vmatpush1.msra.mxu0 0.0
        %1420 = vmatprep.subr.mxu0 0.0
        %1421 = vmatpush1.msra.mxu0 0.0
        %1422 = vmatprep.subr.mxu0 0.0
        %1423 = vmatpush1.msra.mxu0 0.0
        %1424 = vmatprep.subr.mxu0 0.0
        %1425 = vmatpush1.msra.mxu0 0.0
        %1426 = vmatprep.subr.mxu0 0.0
        %1427 = vmatpush1.msra.mxu0 0.0
        %1428 = vmatprep.mubr.f32.mxu0 0.0
        %v1429 = vand.u32 %v277, 4294901760
        %v1430 = vsub.f32 %v277, %v1429
        %v1431 = vand.u32 %v1430, 4294901760
        %1432 = vmatmul.mubr.f32.gmra.mrb[0].mxu0 %v1431
        %v1433 = vpop.f32.mrb[0].mxu0
        %v1434 = vadd.f32 %v1338, %v1433
        %v1435 = vpop.f32.mrb[0].mxu0
        %1436 = vmatprep.mubr.f32.mxu0 0.0
        %v1437 = vand.u32 %v278, 4294901760
        %v1438 = vsub.f32 %v278, %v1437
        %v1439 = vand.u32 %v1438, 4294901760
        %1440 = vmatmul.mubr.f32.gmra.mrb[0].mxu0 %v1439
        %v1441 = vpop.f32.mrb[0].mxu0
        %v1442 = vadd.f32 %v1345, %v1441
        %v1443 = vpop.f32.mrb[0].mxu0
        %1444 = vdwg.mxu0
        %1445 = vmatprep.subr.mxu0 0.0
        %v1446 = vand.u32 %v279, 4294901760
        %v1447 = vsub.f32 %v279, %v1446
        %v1448 = vand.u32 %v1447, 4294901760
        %1449 = vmatpush1.msra.mxu0 %v1448
        %1450 = vmatprep.subr.mxu0 0.0
        %v1451 = vand.u32 %v280, 4294901760
        %v1452 = vsub.f32 %v280, %v1451
        %v1453 = vand.u32 %v1452, 4294901760
        %1454 = vmatpush1.msra.mxu0 %v1453
        %1455 = vmatprep.subr.mxu0 0.0
        %v1456 = vand.u32 %v281, 4294901760
        %v1457 = vsub.f32 %v281, %v1456
        %v1458 = vand.u32 %v1457, 4294901760
        %1459 = vmatpush1.msra.mxu0 %v1458
        %1460 = vmatprep.subr.mxu0 0.0
        %v1461 = vand.u32 %v282, 4294901760
        %v1462 = vsub.f32 %v282, %v1461
        %v1463 = vand.u32 %v1462, 4294901760
        %1464 = vmatpush1.msra.mxu0 %v1463
        %1465 = vmatprep.subr.mxu0 0.0
        %v1466 = vand.u32 %v283, 4294901760
        %v1467 = vsub.f32 %v283, %v1466
        %v1468 = vand.u32 %v1467, 4294901760
        %1469 = vmatpush1.msra.mxu0 %v1468
        %1470 = vmatprep.subr.mxu0 0.0
        %v1471 = vand.u32 %v284, 4294901760
        %v1472 = vsub.f32 %v284, %v1471
        %v1473 = vand.u32 %v1472, 4294901760
        %1474 = vmatpush1.msra.mxu0 %v1473
        %1475 = vmatprep.subr.mxu0 0.0
        %v1476 = vand.u32 %v285, 4294901760
        %v1477 = vsub.f32 %v285, %v1476
        %v1478 = vand.u32 %v1477, 4294901760
        %1479 = vmatpush1.msra.mxu0 %v1478
        %1480 = vmatprep.subr.mxu0 0.0
        %v1481 = vand.u32 %v286, 4294901760
        %v1482 = vsub.f32 %v286, %v1481
        %v1483 = vand.u32 %v1482, 4294901760
        %1484 = vmatpush1.msra.mxu0 %v1483
        %1485 = vmatprep.subr.mxu0 0.0
        %v1486 = vand.u32 %v287, 4294901760
        %v1487 = vsub.f32 %v287, %v1486
        %v1488 = vand.u32 %v1487, 4294901760
        %1489 = vmatpush1.msra.mxu0 %v1488
        %1490 = vmatprep.subr.mxu0 0.0
        %v1491 = vand.u32 %v288, 4294901760
        %v1492 = vsub.f32 %v288, %v1491
        %v1493 = vand.u32 %v1492, 4294901760
        %1494 = vmatpush1.msra.mxu0 %v1493
        %1495 = vmatprep.subr.mxu0 0.0
        %v1496 = vand.u32 %v289, 4294901760
        %v1497 = vsub.f32 %v289, %v1496
        %v1498 = vand.u32 %v1497, 4294901760
        %1499 = vmatpush1.msra.mxu0 %v1498
        %1500 = vmatprep.subr.mxu0 0.0
        %v1501 = vand.u32 %v290, 4294901760
        %v1502 = vsub.f32 %v290, %v1501
        %v1503 = vand.u32 %v1502, 4294901760
        %1504 = vmatpush1.msra.mxu0 %v1503
        %1505 = vmatprep.subr.mxu0 0.0
        %v1506 = vand.u32 %v291, 4294901760
        %v1507 = vsub.f32 %v291, %v1506
        %v1508 = vand.u32 %v1507, 4294901760
        %1509 = vmatpush1.msra.mxu0 %v1508
        %1510 = vmatprep.subr.mxu0 0.0
        %v1511 = vand.u32 %v292, 4294901760
        %v1512 = vsub.f32 %v292, %v1511
        %v1513 = vand.u32 %v1512, 4294901760
        %1514 = vmatpush1.msra.mxu0 %v1513
        %1515 = vmatprep.subr.mxu0 0.0
        %v1516 = vand.u32 %v293, 4294901760
        %v1517 = vsub.f32 %v293, %v1516
        %v1518 = vand.u32 %v1517, 4294901760
        %1519 = vmatpush1.msra.mxu0 %v1518
        %1520 = vmatprep.subr.mxu0 0.0
        %v1521 = vand.u32 %v294, 4294901760
        %v1522 = vsub.f32 %v294, %v1521
        %v1523 = vand.u32 %v1522, 4294901760
        %1524 = vmatpush1.msra.mxu0 %v1523
        %1525 = vmatprep.subr.mxu0 0.0
        %1526 = vmatpush1.msra.mxu0 0.0
        %1527 = vmatprep.subr.mxu0 0.0
        %1528 = vmatpush1.msra.mxu0 0.0
        %1529 = vmatprep.subr.mxu0 0.0
        %1530 = vmatpush1.msra.mxu0 0.0
        %1531 = vmatprep.subr.mxu0 0.0
        %1532 = vmatpush1.msra.mxu0 0.0
        %1533 = vmatprep.subr.mxu0 0.0
        %1534 = vmatpush1.msra.mxu0 0.0
        %1535 = vmatprep.subr.mxu0 0.0
        %1536 = vmatpush1.msra.mxu0 0.0
        %1537 = vmatprep.subr.mxu0 0.0
        %1538 = vmatpush1.msra.mxu0 0.0
        %1539 = vmatprep.subr.mxu0 0.0
        %1540 = vmatpush1.msra.mxu0 0.0
        %1541 = vmatprep.subr.mxu0 0.0
        %1542 = vmatpush1.msra.mxu0 0.0
        %1543 = vmatprep.subr.mxu0 0.0
        %1544 = vmatpush1.msra.mxu0 0.0
        %1545 = vmatprep.subr.mxu0 0.0
        %1546 = vmatpush1.msra.mxu0 0.0
        %1547 = vmatprep.subr.mxu0 0.0
        %1548 = vmatpush1.msra.mxu0 0.0
        %1549 = vmatprep.subr.mxu0 0.0
        %1550 = vmatpush1.msra.mxu0 0.0
        %1551 = vmatprep.subr.mxu0 0.0
        %1552 = vmatpush1.msra.mxu0 0.0
        %1553 = vmatprep.subr.mxu0 0.0
        %1554 = vmatpush1.msra.mxu0 0.0
        %1555 = vmatprep.subr.mxu0 0.0
        %1556 = vmatpush1.msra.mxu0 0.0
        %1557 = vmatprep.mubr.f32.mxu0 0.0
        %v1558 = vand.u32 %v277, 4294901760
        %1559 = vmatmul.mubr.f32.gmra.mrb[0].mxu0 %v1558
        %v1560 = vpop.f32.mrb[0].mxu0
        %v1561 = vadd.f32 %v1434, %v1560
        %v1562 = vpop.f32.mrb[0].mxu0
        %1563 = vmatprep.mubr.f32.mxu0 0.0
        %v1564 = vand.u32 %v278, 4294901760
        %1565 = vmatmul.mubr.f32.gmra.mrb[0].mxu0 %v1564
        %v1566 = vpop.f32.mrb[0].mxu0
        %v1567 = vadd.f32 %v1442, %v1566
        %v1568 = vpop.f32.mrb[0].mxu0
        %1569 = vdwg.mxu0
        %1570 = vmatprep.subr.mxu0 0.0
        %v1571 = vand.u32 %v279, 4294901760
        %1572 = vmatpush1.msra.mxu0 %v1571
        %1573 = vmatprep.subr.mxu0 0.0
        %v1574 = vand.u32 %v280, 4294901760
        %1575 = vmatpush1.msra.mxu0 %v1574
        %1576 = vmatprep.subr.mxu0 0.0
        %v1577 = vand.u32 %v281, 4294901760
        %1578 = vmatpush1.msra.mxu0 %v1577
        %1579 = vmatprep.subr.mxu0 0.0
        %v1580 = vand.u32 %v282, 4294901760
        %1581 = vmatpush1.msra.mxu0 %v1580
        %1582 = vmatprep.subr.mxu0 0.0
        %v1583 = vand.u32 %v283, 4294901760
        %1584 = vmatpush1.msra.mxu0 %v1583
        %1585 = vmatprep.subr.mxu0 0.0
        %v1586 = vand.u32 %v284, 4294901760
        %1587 = vmatpush1.msra.mxu0 %v1586
        %1588 = vmatprep.subr.mxu0 0.0
        %v1589 = vand.u32 %v285, 4294901760
        %1590 = vmatpush1.msra.mxu0 %v1589
        %1591 = vmatprep.subr.mxu0 0.0
        %v1592 = vand.u32 %v286, 4294901760
        %1593 = vmatpush1.msra.mxu0 %v1592
        %1594 = vmatprep.subr.mxu0 0.0
        %v1595 = vand.u32 %v287, 4294901760
        %1596 = vmatpush1.msra.mxu0 %v1595
        %1597 = vmatprep.subr.mxu0 0.0
        %v1598 = vand.u32 %v288, 4294901760
        %1599 = vmatpush1.msra.mxu0 %v1598
        %1600 = vmatprep.subr.mxu0 0.0
        %v1601 = vand.u32 %v289, 4294901760
        %1602 = vmatpush1.msra.mxu0 %v1601
        %1603 = vmatprep.subr.mxu0 0.0
        %v1604 = vand.u32 %v290, 4294901760
        %1605 = vmatpush1.msra.mxu0 %v1604
        %1606 = vmatprep.subr.mxu0 0.0
        %v1607 = vand.u32 %v291, 4294901760
        %1608 = vmatpush1.msra.mxu0 %v1607
        %1609 = vmatprep.subr.mxu0 0.0
        %v1610 = vand.u32 %v292, 4294901760
        %1611 = vmatpush1.msra.mxu0 %v1610
        %1612 = vmatprep.subr.mxu0 0.0
        %v1613 = vand.u32 %v293, 4294901760
        %1614 = vmatpush1.msra.mxu0 %v1613
        %1615 = vmatprep.subr.mxu0 0.0
        %v1616 = vand.u32 %v294, 4294901760
        %1617 = vmatpush1.msra.mxu0 %v1616
        %1618 = vmatprep.subr.mxu0 0.0
        %1619 = vmatpush1.msra.mxu0 0.0
        %1620 = vmatprep.subr.mxu0 0.0
        %1621 = vmatpush1.msra.mxu0 0.0
        %1622 = vmatprep.subr.mxu0 0.0
        %1623 = vmatpush1.msra.mxu0 0.0
        %1624 = vmatprep.subr.mxu0 0.0
        %1625 = vmatpush1.msra.mxu0 0.0
        %1626 = vmatprep.subr.mxu0 0.0
        %1627 = vmatpush1.msra.mxu0 0.0
        %1628 = vmatprep.subr.mxu0 0.0
        %1629 = vmatpush1.msra.mxu0 0.0
        %1630 = vmatprep.subr.mxu0 0.0
        %1631 = vmatpush1.msra.mxu0 0.0
        %1632 = vmatprep.subr.mxu0 0.0
        %1633 = vmatpush1.msra.mxu0 0.0
        %1634 = vmatprep.subr.mxu0 0.0
        %1635 = vmatpush1.msra.mxu0 0.0
        %1636 = vmatprep.subr.mxu0 0.0
        %1637 = vmatpush1.msra.mxu0 0.0
        %1638 = vmatprep.subr.mxu0 0.0
        %1639 = vmatpush1.msra.mxu0 0.0
        %1640 = vmatprep.subr.mxu0 0.0
        %1641 = vmatpush1.msra.mxu0 0.0
        %1642 = vmatprep.subr.mxu0 0.0
        %1643 = vmatpush1.msra.mxu0 0.0
        %1644 = vmatprep.subr.mxu0 0.0
        %1645 = vmatpush1.msra.mxu0 0.0
        %1646 = vmatprep.subr.mxu0 0.0
        %1647 = vmatpush1.msra.mxu0 0.0
        %1648 = vmatprep.subr.mxu0 0.0
        %1649 = vmatpush1.msra.mxu0 0.0
        %1650 = vmatprep.mubr.f32.mxu0 0.0
        %v1651 = vand.u32 %v277, 4294901760
        %1652 = vmatmul.mubr.f32.gmra.mrb[0].mxu0 %v1651
        %v1653 = vpop.f32.mrb[0].mxu0
        %v1654 = vadd.f32 %v1561, %v1653
        %v1655 = vpop.f32.mrb[0].mxu0
        %1656 = vmatprep.mubr.f32.mxu0 0.0
        %v1657 = vand.u32 %v278, 4294901760
        %1658 = vmatmul.mubr.f32.gmra.mrb[0].mxu0 %v1657
        %v1659 = vpop.f32.mrb[0].mxu0
        %v1660 = vadd.f32 %v1567, %v1659
        %v1661 = vpop.f32.mrb[0].mxu0
        %1662 = vdwg.mxu0
        %v1663 = vsub.f32 %v1654, %v970
        %v1664 = vsub.f32 %v1660, %v976
        %v1665 = vmul.f32 %v1663, 0.00390625
        %v1666 = vmul.f32 %v1664, 0.00390625
        %vm1667 = vcmp.eq.f32.partialorder %v1665, 0.0
        %vm1668 = vcmp.eq.f32.partialorder %v1666, 0.0
        %v1669 = vsel %vm1667, 0.0001, %v1665
        %v1670 = vsel %vm1668, 0.0001, %v1666
        %v1671 = vrcp.pop %v1669
        %v1672 = vmul.f32 %v970, %v1671
        %v1673 = vrcp.pop %v1670
        %v1674 = vmul.f32 %v976, %v1673
        %v1675 = vmul.f32 %v179, %v1671
        %v1676 = vmul.f32 %v180, %v1673
        %v1677 = vsub.f32 %v1675, %v1672
        %v1678 = vsub.f32 %v1676, %v1674
        %v1679 = vround.ne.pseudo %v1677
        %v1680 = vround.ne.pseudo %v1678
        %v1681 = vmax.f32 %v1679, 0.0
        %v1682 = vmax.f32 %v1680, 0.0
        %v1683 = vmin.f32 %v1681, 255.0
        %v1684 = vmin.f32 %v1682, 255.0
        %v1685 = vadd.f32 %v1683, %v1672
        %v1686 = vadd.f32 %v1684, %v1674
        %v1687 = vmul.f32 %v1685, %v1669
        %v1688 = vmul.f32 %v1686, %v1670
        %1689 = vst [vmem:[%s176] sm:$0xff] %v1687
        %1690 = vst [vmem:[%s176 + $0x8] sm:$0xff] %v1688
        %s1691 = sand.u32 %s75, 1
        %s1692 = scalar_lea.sflag [#allocation4], %s1691
        %s1693 = sand.u32 %s75, 1
        %s1694 = smul.addr %s1693, 16
        %s1695 = scalar_lea.vmem [#allocation7], %s1694
        // Predicated region
        $region37: #{tpu_custom_call.1} parent=27 // pred_check
          %p1696 = pneg %p85
        $region38: #{tpu_custom_call.1} parent=27 // pred_check_branch
          %1698 = sbr.rel (%p1696) target = $region40
        $region39: #{tpu_custom_call.1} parent=27 // pred_region
          %s1699 = smul.u32 2, %s20
          %s1701 = ssub.s32 256, 256
          %1702 = vsyncadd %s1692, %s1701
          %s1703 = smul.addr %s1699, 128
          %s1704 = scalar_lea.hbm %s2, %s1703
          %s1705 = sshll.u32 %s1695, 4
          %s1706 = int_to_ptr.vmem [resolvable:$true] %s1705
          %1711 = dma.vmem_to_hbm [thread:$0]  %s1706, 256, %s1704, %s1692, 128, 128, 8
        $region40: #{tpu_custom_call.1} parent=27 // pred_fallthru
          _
      $region28: #{tpu_custom_call.1} parent=5 // pred_fallthru
        _
      %p1712 = scmp.le.s32.totalorder 2, %s15
      // Predicated region
      $region41: #{tpu_custom_call.1} parent=5 // pred_check
        %p1713 = pneg %p1712
      $region42: #{tpu_custom_call.1} parent=5 // pred_check_branch
        %1715 = sbr.rel (%p1713) target = $region44
      $region43: #{tpu_custom_call.1} parent=5 // pred_region
        %s1716 = ssub.s32 %s15, 2
        // Predicated region
        $region45: #{tpu_custom_call.1} parent=43 // pred_check
          %p1717 = pneg %p91
        $region46: #{tpu_custom_call.1} parent=43 // pred_check_branch
          %1719 = sbr.rel (%p1717) target = $region48
        $region47: #{tpu_custom_call.1} parent=43 // pred_region
          %s1720 = sand.u32 %s76, 1
          %s1721 = scalar_lea.sflag [#allocation4], %s1720
          %s1722 = sand.u32 %s76, 1
          %s1723 = smul.addr %s1722, 16
          %s1724 = scalar_lea.vmem [#allocation7], %s1723
          %1725 = dma.done %s1721, 256
        $region48: #{tpu_custom_call.1} parent=43 // pred_fallthru
          _
      $region44: #{tpu_custom_call.1} parent=5 // pred_fallthru
        _
    $region6: #{tpu_custom_call.1} parent=1 // loop_footer
      %s19 = sadd.s32 1, %s15
    $region7: #{tpu_custom_call.1} parent=1 // loop_footer_branch
      %14 = sbr.rel target = $region3
    $region8: #{tpu_custom_call.1} parent=1 // loop_exit
      _
    %1726 = vsyncpa [#allocation3], 1
    %s1727 = scalar_lea.sflag [#allocation3], 1
    %1728 = vsyncpa %s1727, 1
    %1729 = vsyncpa [#allocation6], 1
    %1730 = vsyncpa [#allocation4], 1
    %s1731 = scalar_lea.sflag [#allocation4], 1
    %1732 = vsyncpa %s1731, 1

</llo_original>
